<compile_context>
chip_gen: v5e
topology: v5e:2x2
jax: 0.10.0
libtpu: 0.0.40
codegen_flags: <defaults>
</compile_context>

<pallas_src>
import functools

import jax
import jax.numpy as jnp
from jax import lax
from jax.experimental import pallas as pl
from jax.experimental.pallas import tpu as pltpu

LATENT = 5
HIDDEN_DIMS = [512, 256, 128, 64]   # MLPVAE defaults
INPUT_DIM = 128
BATCH = 2

SUBLANE = 8
LANE = 128
BN_EPS = 1e-8
# Scaler(): its nn.Parameter is recreated as zeros every forward, so the
# 'positive' scale is the constant sqrt(tau + (1-tau)*sigmoid(0)) = sqrt(0.75).
# TODO(synk): if the Scaler parameter were persistent/trained this constant
# would be wrong.
SCALER_CONST = 0.75 ** 0.5


def _round_up(x, m):
    return (x + m - 1) // m * m


def _full_spec(shape):
    nd = len(shape)
    return pl.BlockSpec(shape, lambda i, _nd=nd: (0,) * _nd)


# ----------------------------------------------------------------------------
# One fused Pallas kernel: encoder MLP -> latent math -> decoder MLP -> sigmoid
# ----------------------------------------------------------------------------
def _mlpvae_kernel(*refs, n_enc, n_dec, batch, vae_bn):
    x_ref, eps_ref = refs[0], refs[1]
    idx = 2
    enc_wb = refs[idx: idx + 2 * n_enc]; idx += 2 * n_enc
    dec_wb = refs[idx: idx + 2 * n_dec]; idx += 2 * n_dec
    xrec_ref, lat_ref = refs[idx], refs[idx + 1]

    def chain(h, wb, n):
        for i in range(n):
            # Weights may be bf16 in VMEM; jnp.dot promotes to f32 before the
            # MXU op (the bf16 storage is purely to halve HBM weight DMA).
            # Per review #6: sizes here are tiny; RHS streams from VMEM, no
            # spill pressure observed at these shapes.
            w = wb[2 * i][...]
            b = wb[2 * i + 1][...]          # (1, N_pad) f32
            h = jnp.dot(h, w, preferred_element_type=jnp.float32) + b
            if i < n - 1:
                h = jnp.maximum(h, 0.0)     # fused ReLU on hidden layers
        return h

    # ---- encoder: (B_pad, 128) -> (B_pad, 2*LANE); mu in lanes [0:128),
    #      logvar in lanes [128:256) (padded lanes are exactly zero).
    z = chain(x_ref[...], enc_wb, n_enc)
    mu_blk = z[:, :LANE]
    lv_blk = z[:, LANE:]
    eps = eps_ref[...]                       # (B_pad, LANE), padded lanes 0

    if vae_bn:
        # BatchNorm1d(affine=False, eps=1e-8), training-mode batch stats,
        # computed over the REAL batch rows only (padded rows masked out).
        # TODO(synk): running-stat buffers are not tracked (training mode).
        row_mask = (lax.broadcasted_iota(jnp.int32, mu_blk.shape, 0)
                    < batch).astype(jnp.float32)
        inv_b = jnp.float32(1.0 / batch)

        def bn(v):
            m = jnp.sum(v * row_mask, axis=0, keepdims=True) * inv_b
            var = jnp.sum(((v - m) ** 2) * row_mask, axis=0,
                          keepdims=True) * inv_b
            return (v - m) * lax.rsqrt(var + BN_EPS)

        scale = jnp.float32(SCALER_CONST)
        mu_out = bn(mu_blk) * scale                       # mean_norm -> scaler
        std = bn(jnp.exp(0.5 * lv_blk) * scale)           # scaler -> std_norm
    else:
        mu_out = mu_blk
        std = jnp.exp(0.5 * lv_blk)

    z_bar = mu_out + eps * std                            # reparameterize
    # (padded lanes of z_bar are exactly 0 in every branch)

    # ---- decoder + fused sigmoid
    d = chain(z_bar, dec_wb, n_dec)
    xrec_ref[...] = jax.nn.sigmoid(d)

    # ---- lane-dense latent slab: [mu | logvar | z_bar], each 128 lanes wide
    lat_ref[...] = jnp.concatenate([mu_out, lv_blk, z_bar], axis=-1)


# ----------------------------------------------------------------------------
# One-time parameter preparation (pad + transpose + dtype cast, done ONCE)
# ----------------------------------------------------------------------------
def prepare_params(raw):
    """Pad/transpose PyTorch-layout Linear weights once.

    weights[i]: (N, K) PyTorch layout -> (K_pad, N_pad); biases -> (1, N_pad).
    Hidden layers are stored bf16 (halved DMA); the encoder's final (latent)
    layer stays f32.  Zero padding is exact for Linear+ReLU chains.
    """
    def pad_wb(w, b, dtype):
        n_out, k_in = int(w.shape[0]), int(w.shape[1])
        kp, np_ = _round_up(k_in, LANE), _round_up(n_out, LANE)
        wp = jnp.zeros((kp, np_), dtype)
        wp = wp.at[:k_in, :n_out].set(jnp.transpose(w).astype(dtype))
        bp = jnp.zeros((1, np_), jnp.float32)
        bp = bp.at[0, :n_out].set(b.astype(jnp.float32))
        return wp, bp

    enc_ops = []
    n_enc = len(raw["enc_w"])
    for i, (w, b) in enumerate(zip(raw["enc_w"], raw["enc_b"])):
        if i == n_enc - 1:
            # Final encoder layer (64 -> 2*LATENT), kept f32.  Place mu
            # columns in lanes [0:LATENT) and logvar columns in lanes
            # [LANE:LANE+LATENT) so the in-kernel split is lane-aligned.
            k_in = int(w.shape[1])
            kp = _round_up(k_in, LANE)
            wt = jnp.transpose(w).astype(jnp.float32)         # (k_in, 2*LATENT)
            wp = jnp.zeros((kp, 2 * LANE), jnp.float32)
            wp = wp.at[:k_in, :LATENT].set(wt[:, :LATENT])
            wp = wp.at[:k_in, LANE:LANE + LATENT].set(wt[:, LATENT:])
            bp = jnp.zeros((1, 2 * LANE), jnp.float32)
            bp = bp.at[0, :LATENT].set(b[:LATENT].astype(jnp.float32))
            bp = bp.at[0, LANE:LANE + LATENT].set(b[LATENT:].astype(jnp.float32))
        else:
            wp, bp = pad_wb(w, b, jnp.bfloat16)
        enc_ops += [wp, bp]

    dec_ops = []
    for w, b in zip(raw["dec_w"], raw["dec_b"]):
        wp, bp = pad_wb(w, b, jnp.bfloat16)
        dec_ops += [wp, bp]

    return {"enc": enc_ops, "dec": dec_ops}


# ----------------------------------------------------------------------------
# Forward wrapper: one pallas_call per forward
# ----------------------------------------------------------------------------
@functools.partial(jax.jit, static_argnames=("vae_bn",))
def mlpvae_forward(prepared, x, eps_noise, *, vae_bn=0):
    B, K0 = x.shape
    B_pad = _round_up(max(B, SUBLANE), SUBLANE)
    in_pad = _round_up(K0, LANE)
    out_pad = _round_up(INPUT_DIM, LANE)

    x_p = jnp.zeros((B_pad, in_pad), jnp.float32).at[:B, :K0].set(
        x.astype(jnp.float32))
    eps_p = jnp.zeros((B_pad, LANE), jnp.float32).at[:B, :LATENT].set(
        eps_noise.astype(jnp.float32))

    enc_ops, dec_ops = prepared["enc"], prepared["dec"]
    n_enc, n_dec = len(enc_ops) // 2, len(dec_ops) // 2
    ops = [x_p, eps_p] + list(enc_ops) + list(dec_ops)

    kernel = functools.partial(_mlpvae_kernel, n_enc=n_enc, n_dec=n_dec,
                               batch=B, vae_bn=int(vae_bn))
    x_rec_p, lat = pl.pallas_call(
        kernel,
        out_shape=(jax.ShapeDtypeStruct((B_pad, out_pad), jnp.float32),
                   jax.ShapeDtypeStruct((B_pad, 3 * LANE), jnp.float32)),
        grid=(1,),
        in_specs=[_full_spec(a.shape) for a in ops],
        out_specs=(_full_spec((B_pad, out_pad)),
                   _full_spec((B_pad, 3 * LANE))),
        compiler_params=pltpu.CompilerParams(
            dimension_semantics=("arbitrary",),
            vmem_limit_bytes=16 << 20),   # ~1.2 MiB resident; pin the budget
    )(*ops)

    x_rec = x_rec_p[:B, :INPUT_DIM]
    mu = lat[:B, 0:LATENT]
    logvar = lat[:B, LANE:LANE + LATENT]
    z_bar = lat[:B, 2 * LANE:2 * LANE + LATENT]
    return x_rec, z_bar, mu, logvar


# ----------------------------------------------------------------------------
# Pure-JAX reference (uses the same bf16-rounded effective weights)
# ----------------------------------------------------------------------------
def _effective_ref_params(raw):
    def eff(ws, last_f32):
        out = []
        for i, w in enumerate(ws):
            if last_f32 and i == len(ws) - 1:
                out.append(w.astype(jnp.float32))
            else:
                out.append(w.astype(jnp.bfloat16).astype(jnp.float32))
        return out
    return {"enc_w": eff(raw["enc_w"], True), "enc_b": raw["enc_b"],
            "dec_w": eff(raw["dec_w"], False), "dec_b": raw["dec_b"]}


def _bn_ref(v):
    m = jnp.mean(v, axis=0, keepdims=True)
    var = jnp.mean((v - m) ** 2, axis=0, keepdims=True)
    return (v - m) * lax.rsqrt(var + BN_EPS)


def _ref_forward(params, x, eps_noise, vae_bn=0):
    def chain(h, ws, bs, final_act):
        for i, (w, b) in enumerate(zip(ws, bs)):
            h = h @ w.T + b
            if i < len(ws) - 1:
                h = jnp.maximum(h, 0.0)
        if final_act == "sigmoid":
            h = jax.nn.sigmoid(h)
        return h

    z = chain(x, params["enc_w"], params["enc_b"], None)
    mu = z[:, :LATENT]
    logvar = z[:, LATENT:]
    if vae_bn == 1:
        scale = SCALER_CONST
        mu = _bn_ref(mu) * scale
        std = _bn_ref(jnp.exp(0.5 * logvar) * scale)
    else:
        std = jnp.exp(0.5 * logvar)
    z_bar = mu + eps_noise * std
    x_rec = chain(z_bar, params["dec_w"], params["dec_b"], "sigmoid")
    return x_rec, z_bar, mu, logvar


# ----------------------------------------------------------------------------
# Deterministic parameter init (shapes from MLPVAE.__init__ defaults)
# ----------------------------------------------------------------------------
def init_params(key):
    enc_dims = [INPUT_DIM] + HIDDEN_DIMS + [2 * LATENT]
    dec_dims = [LATENT] + HIDDEN_DIMS[::-1] + [INPUT_DIM]
    n_keys = 2 * (len(enc_dims) - 1 + len(dec_dims) - 1)
    keys = iter(jax.random.split(key, n_keys))

    def make(dims):
        ws, bs = [], []
        for k_in, n_out in zip(dims[:-1], dims[1:]):
            lim = 1.0 / float(k_in) ** 0.5
            w = jax.random.uniform(next(keys), (n_out, k_in), jnp.float32,
                                   -lim, lim)
            b = jax.random.uniform(next(keys), (n_out,), jnp.float32,
                                   -lim, lim)
            ws.append(w)
            bs.append(b)
        return ws, bs

    ew, eb = make(enc_dims)
    dw, db = make(dec_dims)
    return {"enc_w": ew, "enc_b": eb, "dec_w": dw, "dec_b": db}


if __name__ == "__main__":
    key = jax.random.PRNGKey(0)
    kp, kx, ke = jax.random.split(key, 3)
    raw_params = init_params(kp)
    prepared = prepare_params(raw_params)          # one-time padding/casting
    ref_params = _effective_ref_params(raw_params)

    x = jax.random.normal(kx, (BATCH, INPUT_DIM), jnp.float32)
    eps_noise = jax.random.normal(ke, (BATCH, LATENT), jnp.float32)  # randn_like

    # Default path (vae_bn=0).
    x_rec, z_bar, mu, logvar = mlpvae_forward(prepared, x, eps_noise, vae_bn=0)
    jax.block_until_ready((x_rec, z_bar, mu, logvar))
    assert x_rec.shape == (BATCH, INPUT_DIM)
    assert z_bar.shape == (BATCH, LATENT)
    assert mu.shape == (BATCH, LATENT) and logvar.shape == (BATCH, LATENT)

    r_rec, r_zbar, r_mu, r_logvar = _ref_forward(ref_params, x, eps_noise, 0)
    assert bool(jnp.max(jnp.abs(x_rec - r_rec)) < 2e-3)
    assert bool(jnp.max(jnp.abs(z_bar - r_zbar)) < 2e-3)
    assert bool(jnp.max(jnp.abs(mu - r_mu)) < 2e-3)
    assert bool(jnp.max(jnp.abs(logvar - r_logvar)) < 2e-3)

    # BN/Scaler path (vae_bn=1).
    out_bn = mlpvae_forward(prepared, x, eps_noise, vae_bn=1)
    jax.block_until_ready(out_bn)
    ref_bn = _ref_forward(ref_params, x, eps_noise, 1)
    for got, want in zip(out_bn, ref_bn):
        assert bool(jnp.max(jnp.abs(got - want)) < 2e-3)

    print("KERNEL_OK")
</pallas_src>

<mosaic_0001>
module attributes {stable_mosaic.version = 11 : i64} {
  func.func @_mlpvae_kernel(%arg0: i32, %arg1: memref<8x128xf32, #tpu.memory_space<vmem>>, %arg2: memref<8x128xf32, #tpu.memory_space<vmem>>, %arg3: memref<128x512xbf16, #tpu.memory_space<vmem>>, %arg4: memref<1x512xf32, #tpu.memory_space<vmem>>, %arg5: memref<512x256xbf16, #tpu.memory_space<vmem>>, %arg6: memref<1x256xf32, #tpu.memory_space<vmem>>, %arg7: memref<256x128xbf16, #tpu.memory_space<vmem>>, %arg8: memref<1x128xf32, #tpu.memory_space<vmem>>, %arg9: memref<128x128xbf16, #tpu.memory_space<vmem>>, %arg10: memref<1x128xf32, #tpu.memory_space<vmem>>, %arg11: memref<128x256xf32, #tpu.memory_space<vmem>>, %arg12: memref<1x256xf32, #tpu.memory_space<vmem>>, %arg13: memref<128x128xbf16, #tpu.memory_space<vmem>>, %arg14: memref<1x128xf32, #tpu.memory_space<vmem>>, %arg15: memref<128x128xbf16, #tpu.memory_space<vmem>>, %arg16: memref<1x128xf32, #tpu.memory_space<vmem>>, %arg17: memref<128x256xbf16, #tpu.memory_space<vmem>>, %arg18: memref<1x256xf32, #tpu.memory_space<vmem>>, %arg19: memref<256x512xbf16, #tpu.memory_space<vmem>>, %arg20: memref<1x512xf32, #tpu.memory_space<vmem>>, %arg21: memref<512x128xbf16, #tpu.memory_space<vmem>>, %arg22: memref<1x128xf32, #tpu.memory_space<vmem>>, %arg23: memref<8x128xf32, #tpu.memory_space<vmem>>, %arg24: memref<8x384xf32, #tpu.memory_space<vmem>>) attributes {dimension_semantics = [#tpu.dimension_semantics<arbitrary>], iteration_bounds = array<i64: 1>, scalar_prefetch = 0 : i64, scratch_operands = 0 : i64, tpu.core_type = #tpu.core_type<tc>, window_params = [{pipeline_mode = #tpu.pipeline_mode<synchronous>, transform_indices = @transform_0, window_bounds = array<i64: 8, 128>}, {pipeline_mode = #tpu.pipeline_mode<synchronous>, transform_indices = @transform_1, window_bounds = array<i64: 8, 128>}, {pipeline_mode = #tpu.pipeline_mode<synchronous>, transform_indices = @transform_2, window_bounds = array<i64: 128, 512>}, {pipeline_mode = #tpu.pipeline_mode<synchronous>, transform_indices = @transform_3, window_bounds = array<i64: 1, 512>}, {pipeline_mode = #tpu.pipeline_mode<synchronous>, transform_indices = @transform_4, window_bounds = array<i64: 512, 256>}, {pipeline_mode = #tpu.pipeline_mode<synchronous>, transform_indices = @transform_5, window_bounds = array<i64: 1, 256>}, {pipeline_mode = #tpu.pipeline_mode<synchronous>, transform_indices = @transform_6, window_bounds = array<i64: 256, 128>}, {pipeline_mode = #tpu.pipeline_mode<synchronous>, transform_indices = @transform_7, window_bounds = array<i64: 1, 128>}, {pipeline_mode = #tpu.pipeline_mode<synchronous>, transform_indices = @transform_8, window_bounds = array<i64: 128, 128>}, {pipeline_mode = #tpu.pipeline_mode<synchronous>, transform_indices = @transform_9, window_bounds = array<i64: 1, 128>}, {pipeline_mode = #tpu.pipeline_mode<synchronous>, transform_indices = @transform_10, window_bounds = array<i64: 128, 256>}, {pipeline_mode = #tpu.pipeline_mode<synchronous>, transform_indices = @transform_11, window_bounds = array<i64: 1, 256>}, {pipeline_mode = #tpu.pipeline_mode<synchronous>, transform_indices = @transform_12, window_bounds = array<i64: 128, 128>}, {pipeline_mode = #tpu.pipeline_mode<synchronous>, transform_indices = @transform_13, window_bounds = array<i64: 1, 128>}, {pipeline_mode = #tpu.pipeline_mode<synchronous>, transform_indices = @transform_14, window_bounds = array<i64: 128, 128>}, {pipeline_mode = #tpu.pipeline_mode<synchronous>, transform_indices = @transform_15, window_bounds = array<i64: 1, 128>}, {pipeline_mode = #tpu.pipeline_mode<synchronous>, transform_indices = @transform_16, window_bounds = array<i64: 128, 256>}, {pipeline_mode = #tpu.pipeline_mode<synchronous>, transform_indices = @transform_17, window_bounds = array<i64: 1, 256>}, {pipeline_mode = #tpu.pipeline_mode<synchronous>, transform_indices = @transform_18, window_bounds = array<i64: 256, 512>}, {pipeline_mode = #tpu.pipeline_mode<synchronous>, transform_indices = @transform_19, window_bounds = array<i64: 1, 512>}, {pipeline_mode = #tpu.pipeline_mode<synchronous>, transform_indices = @transform_20, window_bounds = array<i64: 512, 128>}, {pipeline_mode = #tpu.pipeline_mode<synchronous>, transform_indices = @transform_21, window_bounds = array<i64: 1, 128>}, {pipeline_mode = #tpu.pipeline_mode<synchronous>, transform_indices = @transform_22, window_bounds = array<i64: 8, 128>}, {pipeline_mode = #tpu.pipeline_mode<synchronous>, transform_indices = @transform_23, window_bounds = array<i64: 8, 384>}]} {
    %c0 = arith.constant 0 : index
    %c0_0 = arith.constant 0 : index
    %0 = vector.load %arg1[%c0, %c0_0] : memref<8x128xf32, #tpu.memory_space<vmem>>, vector<8x128xf32>
    %c0_1 = arith.constant 0 : index
    %c0_2 = arith.constant 0 : index
    %1 = vector.load %arg3[%c0_1, %c0_2] : memref<128x512xbf16, #tpu.memory_space<vmem>>, vector<128x512xbf16>
    %c0_3 = arith.constant 0 : index
    %c0_4 = arith.constant 0 : index
    %2 = vector.load %arg4[%c0_3, %c0_4] : memref<1x512xf32, #tpu.memory_space<vmem>>, vector<1x512xf32>
    %cst = arith.constant dense<0.000000e+00> : vector<8x512xf32>
    %3 = tpu.matmul %0, %1, %cst {dimension_numbers = #tpu.dot_dimension_numbers<[1], [0], [0], [1], [0, 0, 1, 1], [], []>} : vector<8x128xf32>, vector<128x512xbf16>, vector<8x512xf32> -> vector<8x512xf32>
    %4 = vector.broadcast %2 : vector<1x512xf32> to vector<8x512xf32>
    %5 = arith.addf %3, %4 : vector<8x512xf32>
    %cst_5 = arith.constant 0.000000e+00 : f32
    %6 = vector.broadcast %cst_5 : f32 to vector<8x512xf32>
    %7 = arith.maximumf %5, %6 : vector<8x512xf32>
    %c0_6 = arith.constant 0 : index
    %c0_7 = arith.constant 0 : index
    %8 = vector.load %arg5[%c0_6, %c0_7] : memref<512x256xbf16, #tpu.memory_space<vmem>>, vector<512x256xbf16>
    %c0_8 = arith.constant 0 : index
    %c0_9 = arith.constant 0 : index
    %9 = vector.load %arg6[%c0_8, %c0_9] : memref<1x256xf32, #tpu.memory_space<vmem>>, vector<1x256xf32>
    %cst_10 = arith.constant dense<0.000000e+00> : vector<8x256xf32>
    %10 = tpu.matmul %7, %8, %cst_10 {dimension_numbers = #tpu.dot_dimension_numbers<[1], [0], [0], [1], [0, 0, 1, 1], [], []>} : vector<8x512xf32>, vector<512x256xbf16>, vector<8x256xf32> -> vector<8x256xf32>
    %11 = vector.broadcast %9 : vector<1x256xf32> to vector<8x256xf32>
    %12 = arith.addf %10, %11 : vector<8x256xf32>
    %cst_11 = arith.constant 0.000000e+00 : f32
    %13 = vector.broadcast %cst_11 : f32 to vector<8x256xf32>
    %14 = arith.maximumf %12, %13 : vector<8x256xf32>
    %c0_12 = arith.constant 0 : index
    %c0_13 = arith.constant 0 : index
    %15 = vector.load %arg7[%c0_12, %c0_13] : memref<256x128xbf16, #tpu.memory_space<vmem>>, vector<256x128xbf16>
    %c0_14 = arith.constant 0 : index
    %c0_15 = arith.constant 0 : index
    %16 = vector.load %arg8[%c0_14, %c0_15] : memref<1x128xf32, #tpu.memory_space<vmem>>, vector<1x128xf32>
    %cst_16 = arith.constant dense<0.000000e+00> : vector<8x128xf32>
    %17 = tpu.matmul %14, %15, %cst_16 {dimension_numbers = #tpu.dot_dimension_numbers<[1], [0], [0], [1], [0, 0, 1, 1], [], []>} : vector<8x256xf32>, vector<256x128xbf16>, vector<8x128xf32> -> vector<8x128xf32>
    %18 = vector.broadcast %16 : vector<1x128xf32> to vector<8x128xf32>
    %19 = arith.addf %17, %18 : vector<8x128xf32>
    %cst_17 = arith.constant 0.000000e+00 : f32
    %20 = vector.broadcast %cst_17 : f32 to vector<8x128xf32>
    %21 = arith.maximumf %19, %20 : vector<8x128xf32>
    %c0_18 = arith.constant 0 : index
    %c0_19 = arith.constant 0 : index
    %22 = vector.load %arg9[%c0_18, %c0_19] : memref<128x128xbf16, #tpu.memory_space<vmem>>, vector<128x128xbf16>
    %c0_20 = arith.constant 0 : index
    %c0_21 = arith.constant 0 : index
    %23 = vector.load %arg10[%c0_20, %c0_21] : memref<1x128xf32, #tpu.memory_space<vmem>>, vector<1x128xf32>
    %cst_22 = arith.constant dense<0.000000e+00> : vector<8x128xf32>
    %24 = tpu.matmul %21, %22, %cst_22 {dimension_numbers = #tpu.dot_dimension_numbers<[1], [0], [0], [1], [0, 0, 1, 1], [], []>} : vector<8x128xf32>, vector<128x128xbf16>, vector<8x128xf32> -> vector<8x128xf32>
    %25 = vector.broadcast %23 : vector<1x128xf32> to vector<8x128xf32>
    %26 = arith.addf %24, %25 : vector<8x128xf32>
    %cst_23 = arith.constant 0.000000e+00 : f32
    %27 = vector.broadcast %cst_23 : f32 to vector<8x128xf32>
    %28 = arith.maximumf %26, %27 : vector<8x128xf32>
    %c0_24 = arith.constant 0 : index
    %c0_25 = arith.constant 0 : index
    %29 = vector.load %arg11[%c0_24, %c0_25] : memref<128x256xf32, #tpu.memory_space<vmem>>, vector<128x256xf32>
    %c0_26 = arith.constant 0 : index
    %c0_27 = arith.constant 0 : index
    %30 = vector.load %arg12[%c0_26, %c0_27] : memref<1x256xf32, #tpu.memory_space<vmem>>, vector<1x256xf32>
    %cst_28 = arith.constant dense<0.000000e+00> : vector<8x256xf32>
    %31 = tpu.matmul %28, %29, %cst_28 {dimension_numbers = #tpu.dot_dimension_numbers<[1], [0], [0], [1], [0, 0, 1, 1], [], []>} : vector<8x128xf32>, vector<128x256xf32>, vector<8x256xf32> -> vector<8x256xf32>
    %32 = vector.broadcast %30 : vector<1x256xf32> to vector<8x256xf32>
    %33 = arith.addf %31, %32 : vector<8x256xf32>
    %34 = vector.extract_strided_slice %33 {offsets = [0, 0], sizes = [8, 128], strides = [1, 1]} : vector<8x256xf32> to vector<8x128xf32>
    %35 = vector.extract_strided_slice %33 {offsets = [0, 128], sizes = [8, 128], strides = [1, 1]} : vector<8x256xf32> to vector<8x128xf32>
    %c0_29 = arith.constant 0 : index
    %c0_30 = arith.constant 0 : index
    %36 = vector.load %arg2[%c0_29, %c0_30] : memref<8x128xf32, #tpu.memory_space<vmem>>, vector<8x128xf32>
    %cst_31 = arith.constant 5.000000e-01 : f32
    %37 = vector.broadcast %cst_31 : f32 to vector<8x128xf32>
    %38 = arith.mulf %37, %35 : vector<8x128xf32>
    %39 = math.exp %38 : vector<8x128xf32>
    %40 = arith.mulf %36, %39 : vector<8x128xf32>
    %41 = arith.addf %34, %40 : vector<8x128xf32>
    %c0_32 = arith.constant 0 : index
    %c0_33 = arith.constant 0 : index
    %42 = vector.load %arg13[%c0_32, %c0_33] : memref<128x128xbf16, #tpu.memory_space<vmem>>, vector<128x128xbf16>
    %c0_34 = arith.constant 0 : index
    %c0_35 = arith.constant 0 : index
    %43 = vector.load %arg14[%c0_34, %c0_35] : memref<1x128xf32, #tpu.memory_space<vmem>>, vector<1x128xf32>
    %cst_36 = arith.constant dense<0.000000e+00> : vector<8x128xf32>
    %44 = tpu.matmul %41, %42, %cst_36 {dimension_numbers = #tpu.dot_dimension_numbers<[1], [0], [0], [1], [0, 0, 1, 1], [], []>} : vector<8x128xf32>, vector<128x128xbf16>, vector<8x128xf32> -> vector<8x128xf32>
    %45 = vector.broadcast %43 : vector<1x128xf32> to vector<8x128xf32>
    %46 = arith.addf %44, %45 : vector<8x128xf32>
    %cst_37 = arith.constant 0.000000e+00 : f32
    %47 = vector.broadcast %cst_37 : f32 to vector<8x128xf32>
    %48 = arith.maximumf %46, %47 : vector<8x128xf32>
    %c0_38 = arith.constant 0 : index
    %c0_39 = arith.constant 0 : index
    %49 = vector.load %arg15[%c0_38, %c0_39] : memref<128x128xbf16, #tpu.memory_space<vmem>>, vector<128x128xbf16>
    %c0_40 = arith.constant 0 : index
    %c0_41 = arith.constant 0 : index
    %50 = vector.load %arg16[%c0_40, %c0_41] : memref<1x128xf32, #tpu.memory_space<vmem>>, vector<1x128xf32>
    %cst_42 = arith.constant dense<0.000000e+00> : vector<8x128xf32>
    %51 = tpu.matmul %48, %49, %cst_42 {dimension_numbers = #tpu.dot_dimension_numbers<[1], [0], [0], [1], [0, 0, 1, 1], [], []>} : vector<8x128xf32>, vector<128x128xbf16>, vector<8x128xf32> -> vector<8x128xf32>
    %52 = vector.broadcast %50 : vector<1x128xf32> to vector<8x128xf32>
    %53 = arith.addf %51, %52 : vector<8x128xf32>
    %cst_43 = arith.constant 0.000000e+00 : f32
    %54 = vector.broadcast %cst_43 : f32 to vector<8x128xf32>
    %55 = arith.maximumf %53, %54 : vector<8x128xf32>
    %c0_44 = arith.constant 0 : index
    %c0_45 = arith.constant 0 : index
    %56 = vector.load %arg17[%c0_44, %c0_45] : memref<128x256xbf16, #tpu.memory_space<vmem>>, vector<128x256xbf16>
    %c0_46 = arith.constant 0 : index
    %c0_47 = arith.constant 0 : index
    %57 = vector.load %arg18[%c0_46, %c0_47] : memref<1x256xf32, #tpu.memory_space<vmem>>, vector<1x256xf32>
    %cst_48 = arith.constant dense<0.000000e+00> : vector<8x256xf32>
    %58 = tpu.matmul %55, %56, %cst_48 {dimension_numbers = #tpu.dot_dimension_numbers<[1], [0], [0], [1], [0, 0, 1, 1], [], []>} : vector<8x128xf32>, vector<128x256xbf16>, vector<8x256xf32> -> vector<8x256xf32>
    %59 = vector.broadcast %57 : vector<1x256xf32> to vector<8x256xf32>
    %60 = arith.addf %58, %59 : vector<8x256xf32>
    %cst_49 = arith.constant 0.000000e+00 : f32
    %61 = vector.broadcast %cst_49 : f32 to vector<8x256xf32>
    %62 = arith.maximumf %60, %61 : vector<8x256xf32>
    %c0_50 = arith.constant 0 : index
    %c0_51 = arith.constant 0 : index
    %63 = vector.load %arg19[%c0_50, %c0_51] : memref<256x512xbf16, #tpu.memory_space<vmem>>, vector<256x512xbf16>
    %c0_52 = arith.constant 0 : index
    %c0_53 = arith.constant 0 : index
    %64 = vector.load %arg20[%c0_52, %c0_53] : memref<1x512xf32, #tpu.memory_space<vmem>>, vector<1x512xf32>
    %cst_54 = arith.constant dense<0.000000e+00> : vector<8x512xf32>
    %65 = tpu.matmul %62, %63, %cst_54 {dimension_numbers = #tpu.dot_dimension_numbers<[1], [0], [0], [1], [0, 0, 1, 1], [], []>} : vector<8x256xf32>, vector<256x512xbf16>, vector<8x512xf32> -> vector<8x512xf32>
    %66 = vector.broadcast %64 : vector<1x512xf32> to vector<8x512xf32>
    %67 = arith.addf %65, %66 : vector<8x512xf32>
    %cst_55 = arith.constant 0.000000e+00 : f32
    %68 = vector.broadcast %cst_55 : f32 to vector<8x512xf32>
    %69 = arith.maximumf %67, %68 : vector<8x512xf32>
    %c0_56 = arith.constant 0 : index
    %c0_57 = arith.constant 0 : index
    %70 = vector.load %arg21[%c0_56, %c0_57] : memref<512x128xbf16, #tpu.memory_space<vmem>>, vector<512x128xbf16>
    %c0_58 = arith.constant 0 : index
    %c0_59 = arith.constant 0 : index
    %71 = vector.load %arg22[%c0_58, %c0_59] : memref<1x128xf32, #tpu.memory_space<vmem>>, vector<1x128xf32>
    %cst_60 = arith.constant dense<0.000000e+00> : vector<8x128xf32>
    %72 = tpu.matmul %69, %70, %cst_60 {dimension_numbers = #tpu.dot_dimension_numbers<[1], [0], [0], [1], [0, 0, 1, 1], [], []>} : vector<8x512xf32>, vector<512x128xbf16>, vector<8x128xf32> -> vector<8x128xf32>
    %73 = vector.broadcast %71 : vector<1x128xf32> to vector<8x128xf32>
    %74 = arith.addf %72, %73 : vector<8x128xf32>
    %75 = arith.negf %74 : vector<8x128xf32>
    %76 = math.exp %75 : vector<8x128xf32>
    %cst_61 = arith.constant 1.000000e+00 : f32
    %77 = vector.broadcast %cst_61 : f32 to vector<8x128xf32>
    %78 = arith.addf %77, %76 : vector<8x128xf32>
    %79 = arith.divf %77, %78 : vector<8x128xf32>
    %c0_62 = arith.constant 0 : index
    %c0_63 = arith.constant 0 : index
    %80 = vector.load %arg23[%c0_62, %c0_63] : memref<8x128xf32, #tpu.memory_space<vmem>>, vector<8x128xf32>
    tpu.vector_store %arg23[%c0_62, %c0_63], %79 {strides = array<i32>} : memref<8x128xf32, #tpu.memory_space<vmem>>, vector<8x128xf32>,
    %81 = tpu.concatenate %34, %35, %41 in 1 : vector<8x128xf32>, vector<8x128xf32>, vector<8x128xf32> -> vector<8x384xf32>
    %c0_64 = arith.constant 0 : index
    %c0_65 = arith.constant 0 : index
    %82 = vector.load %arg24[%c0_64, %c0_65] : memref<8x384xf32, #tpu.memory_space<vmem>>, vector<8x384xf32>
    tpu.vector_store %arg24[%c0_64, %c0_65], %81 {strides = array<i32>} : memref<8x384xf32, #tpu.memory_space<vmem>>, vector<8x384xf32>,
    return
  }
  func.func @transform_0(%arg0: i32) -> (i32, i32) {
    %c0_i32 = arith.constant 0 : i32
    %c0_i32_0 = arith.constant 0 : i32
    %c0_i32_1 = arith.constant 0 : i32
    return %c0_i32, %c0_i32_0 : i32, i32
  }
  func.func @transform_1(%arg0: i32) -> (i32, i32) {
    %c0_i32 = arith.constant 0 : i32
    %c0_i32_0 = arith.constant 0 : i32
    %c0_i32_1 = arith.constant 0 : i32
    return %c0_i32, %c0_i32_0 : i32, i32
  }
  func.func @transform_2(%arg0: i32) -> (i32, i32) {
    %c0_i32 = arith.constant 0 : i32
    %c0_i32_0 = arith.constant 0 : i32
    %c0_i32_1 = arith.constant 0 : i32
    return %c0_i32, %c0_i32_0 : i32, i32
  }
  func.func @transform_3(%arg0: i32) -> (i32, i32) {
    %c0_i32 = arith.constant 0 : i32
    %c0_i32_0 = arith.constant 0 : i32
    %c0_i32_1 = arith.constant 0 : i32
    return %c0_i32, %c0_i32_0 : i32, i32
  }
  func.func @transform_4(%arg0: i32) -> (i32, i32) {
    %c0_i32 = arith.constant 0 : i32
    %c0_i32_0 = arith.constant 0 : i32
    %c0_i32_1 = arith.constant 0 : i32
    return %c0_i32, %c0_i32_0 : i32, i32
  }
  func.func @transform_5(%arg0: i32) -> (i32, i32) {
    %c0_i32 = arith.constant 0 : i32
    %c0_i32_0 = arith.constant 0 : i32
    %c0_i32_1 = arith.constant 0 : i32
    return %c0_i32, %c0_i32_0 : i32, i32
  }
  func.func @transform_6(%arg0: i32) -> (i32, i32) {
    %c0_i32 = arith.constant 0 : i32
    %c0_i32_0 = arith.constant 0 : i32
    %c0_i32_1 = arith.constant 0 : i32
    return %c0_i32, %c0_i32_0 : i32, i32
  }
  func.func @transform_7(%arg0: i32) -> (i32, i32) {
    %c0_i32 = arith.constant 0 : i32
    %c0_i32_0 = arith.constant 0 : i32
    %c0_i32_1 = arith.constant 0 : i32
    return %c0_i32, %c0_i32_0 : i32, i32
  }
  func.func @transform_8(%arg0: i32) -> (i32, i32) {
    %c0_i32 = arith.constant 0 : i32
    %c0_i32_0 = arith.constant 0 : i32
    %c0_i32_1 = arith.constant 0 : i32
    return %c0_i32, %c0_i32_0 : i32, i32
  }
  func.func @transform_9(%arg0: i32) -> (i32, i32) {
    %c0_i32 = arith.constant 0 : i32
    %c0_i32_0 = arith.constant 0 : i32
    %c0_i32_1 = arith.constant 0 : i32
    return %c0_i32, %c0_i32_0 : i32, i32
  }
  func.func @transform_10(%arg0: i32) -> (i32, i32) {
    %c0_i32 = arith.constant 0 : i32
    %c0_i32_0 = arith.constant 0 : i32
    %c0_i32_1 = arith.constant 0 : i32
    return %c0_i32, %c0_i32_0 : i32, i32
  }
  func.func @transform_11(%arg0: i32) -> (i32, i32) {
    %c0_i32 = arith.constant 0 : i32
    %c0_i32_0 = arith.constant 0 : i32
    %c0_i32_1 = arith.constant 0 : i32
    return %c0_i32, %c0_i32_0 : i32, i32
  }
  func.func @transform_12(%arg0: i32) -> (i32, i32) {
    %c0_i32 = arith.constant 0 : i32
    %c0_i32_0 = arith.constant 0 : i32
    %c0_i32_1 = arith.constant 0 : i32
    return %c0_i32, %c0_i32_0 : i32, i32
  }
  func.func @transform_13(%arg0: i32) -> (i32, i32) {
    %c0_i32 = arith.constant 0 : i32
    %c0_i32_0 = arith.constant 0 : i32
    %c0_i32_1 = arith.constant 0 : i32
    return %c0_i32, %c0_i32_0 : i32, i32
  }
  func.func @transform_14(%arg0: i32) -> (i32, i32) {
    %c0_i32 = arith.constant 0 : i32
    %c0_i32_0 = arith.constant 0 : i32
    %c0_i32_1 = arith.constant 0 : i32
    return %c0_i32, %c0_i32_0 : i32, i32
  }
  func.func @transform_15(%arg0: i32) -> (i32, i32) {
    %c0_i32 = arith.constant 0 : i32
    %c0_i32_0 = arith.constant 0 : i32
    %c0_i32_1 = arith.constant 0 : i32
    return %c0_i32, %c0_i32_0 : i32, i32
  }
  func.func @transform_16(%arg0: i32) -> (i32, i32) {
    %c0_i32 = arith.constant 0 : i32
    %c0_i32_0 = arith.constant 0 : i32
    %c0_i32_1 = arith.constant 0 : i32
    return %c0_i32, %c0_i32_0 : i32, i32
  }
  func.func @transform_17(%arg0: i32) -> (i32, i32) {
    %c0_i32 = arith.constant 0 : i32
    %c0_i32_0 = arith.constant 0 : i32
    %c0_i32_1 = arith.constant 0 : i32
    return %c0_i32, %c0_i32_0 : i32, i32
  }
  func.func @transform_18(%arg0: i32) -> (i32, i32) {
    %c0_i32 = arith.constant 0 : i32
    %c0_i32_0 = arith.constant 0 : i32
    %c0_i32_1 = arith.constant 0 : i32
    return %c0_i32, %c0_i32_0 : i32, i32
  }
  func.func @transform_19(%arg0: i32) -> (i32, i32) {
    %c0_i32 = arith.constant 0 : i32
    %c0_i32_0 = arith.constant 0 : i32
    %c0_i32_1 = arith.constant 0 : i32
    return %c0_i32, %c0_i32_0 : i32, i32
  }
  func.func @transform_20(%arg0: i32) -> (i32, i32) {
    %c0_i32 = arith.constant 0 : i32
    %c0_i32_0 = arith.constant 0 : i32
    %c0_i32_1 = arith.constant 0 : i32
    return %c0_i32, %c0_i32_0 : i32, i32
  }
  func.func @transform_21(%arg0: i32) -> (i32, i32) {
    %c0_i32 = arith.constant 0 : i32
    %c0_i32_0 = arith.constant 0 : i32
    %c0_i32_1 = arith.constant 0 : i32
    return %c0_i32, %c0_i32_0 : i32, i32
  }
  func.func @transform_22(%arg0: i32) -> (i32, i32) {
    %c0_i32 = arith.constant 0 : i32
    %c0_i32_0 = arith.constant 0 : i32
    %c0_i32_1 = arith.constant 0 : i32
    return %c0_i32, %c0_i32_0 : i32, i32
  }
  func.func @transform_23(%arg0: i32) -> (i32, i32) {
    %c0_i32 = arith.constant 0 : i32
    %c0_i32_0 = arith.constant 0 : i32
    %c0_i32_1 = arith.constant 0 : i32
    return %c0_i32, %c0_i32_0 : i32, i32
  }
}

</mosaic_0001>

<llo_original>
// kernel: mlpvae_forward.1
$region0: #{mlpvae_forward.1}
  #allocation0 [shape = 'u32[]', space=smem, size = 0x4, offset = 0x4, fixed_abs, tag = 'smem constant byte address 0x4 - core index']
  #allocation1 [shape = 'u32[72,128]{1,0:T(1,128)}', space=vmem, size = 0x9000, scoped, tag = 'internal scratch']
  %s0 = inlined_call_operand.vmem [shape: f32[8,128], index: 0, kind: input, shape index: {}]
  %s1 = inlined_call_operand.vmem [shape: f32[8,128], index: 1, kind: input, shape index: {}]
  %s2 = inlined_call_operand.hbm [shape: bf16[128,512], index: 2, kind: input, shape index: {}]
  %s3 = inlined_call_operand.vmem [shape: f32[1,512], index: 3, kind: input, shape index: {}]
  %s4 = inlined_call_operand.hbm [shape: bf16[512,256], index: 4, kind: input, shape index: {}]
  %s5 = inlined_call_operand.vmem [shape: f32[1,256], index: 5, kind: input, shape index: {}]
  %s6 = inlined_call_operand.hbm [shape: bf16[256,128], index: 6, kind: input, shape index: {}]
  %s7 = inlined_call_operand.vmem [shape: f32[1,128], index: 7, kind: input, shape index: {}]
  %s8 = inlined_call_operand.hbm [shape: bf16[128,128], index: 8, kind: input, shape index: {}]
  %s9 = inlined_call_operand.vmem [shape: f32[1,128], index: 9, kind: input, shape index: {}]
  %s10 = inlined_call_operand.hbm [shape: f32[128,256], index: 10, kind: input, shape index: {}]
  %s11 = inlined_call_operand.vmem [shape: f32[1,256], index: 11, kind: input, shape index: {}]
  %s12 = inlined_call_operand.hbm [shape: bf16[128,128], index: 12, kind: input, shape index: {}]
  %s13 = inlined_call_operand.vmem [shape: f32[1,128], index: 13, kind: input, shape index: {}]
  %s14 = inlined_call_operand.hbm [shape: bf16[128,128], index: 14, kind: input, shape index: {}]
  %s15 = inlined_call_operand.vmem [shape: f32[1,128], index: 15, kind: input, shape index: {}]
  %s16 = inlined_call_operand.hbm [shape: bf16[128,256], index: 16, kind: input, shape index: {}]
  %s17 = inlined_call_operand.vmem [shape: f32[1,256], index: 17, kind: input, shape index: {}]
  %s18 = inlined_call_operand.hbm [shape: bf16[256,512], index: 18, kind: input, shape index: {}]
  %s19 = inlined_call_operand.vmem [shape: f32[1,512], index: 19, kind: input, shape index: {}]
  %s20 = inlined_call_operand.hbm [shape: bf16[512,128], index: 20, kind: input, shape index: {}]
  %s21 = inlined_call_operand.vmem [shape: f32[1,128], index: 21, kind: input, shape index: {}]
  %s22 = inlined_call_operand.vmem [shape: f32[8,128], index: 22, kind: output, shape index: {0}]
  %s23 = inlined_call_operand.vmem [shape: f32[8,384], index: 23, kind: output, shape index: {1}]
  %24 = xla_tuple %s22, %s23
  %s25 = sld [smem:[#allocation0]]
  $region146: #{mlpvae_forward.1} parent=0
    _
  %s27 = ssub.s32 1, %s25
  %s28 = scalar_select 0, %s27, %s25
  $region1: #{mlpvae_forward.1} parent=0
    #allocation2 [shape = 'u8[131072]{0}', space=vmem, size = 0x20000, scoped, tag = 'input window, operand 2, single buffered']
    #allocation3 [shape = 's32[1]{0}', space=sflag, size = 0x4, scoped, tag = 'scoped memory for mlpvae_forward.1']
    #allocation4 [shape = 'u8[262144]{0}', space=vmem, size = 0x40000, scoped, tag = 'input window, operand 4, single buffered']
    #allocation5 [shape = 's32[1]{0}', space=sflag, size = 0x4, scoped, tag = 'scoped memory for mlpvae_forward.1']
    #allocation6 [shape = 'u8[65536]{0}', space=vmem, size = 0x10000, scoped, tag = 'input window, operand 6, single buffered']
    #allocation7 [shape = 'u8[32768]{0}', space=vmem, size = 0x8000, scoped, tag = 'input window, operand 8, single buffered']
    #allocation8 [shape = 's32[1]{0}', space=sflag, size = 0x4, scoped, tag = 'scoped memory for mlpvae_forward.1']
    #allocation9 [shape = 'u8[131072]{0}', space=vmem, size = 0x20000, scoped, tag = 'input window, operand 10, single buffered']
    #allocation10 [shape = 'u8[32768]{0}', space=vmem, size = 0x8000, scoped, tag = 'input window, operand 12, single buffered']
    #allocation11 [shape = 's32[1]{0}', space=sflag, size = 0x4, scoped, tag = 'scoped memory for mlpvae_forward.1']
    #allocation12 [shape = 'u8[32768]{0}', space=vmem, size = 0x8000, scoped, tag = 'input window, operand 14, single buffered']
    #allocation13 [shape = 'u8[65536]{0}', space=vmem, size = 0x10000, scoped, tag = 'input window, operand 16, single buffered']
    #allocation14 [shape = 's32[1]{0}', space=sflag, size = 0x4, scoped, tag = 'scoped memory for mlpvae_forward.1']
    #allocation15 [shape = 'u8[262144]{0}', space=vmem, size = 0x40000, scoped, tag = 'input window, operand 18, single buffered']
    #allocation16 [shape = 'u8[131072]{0}', space=vmem, size = 0x20000, scoped, tag = 'input window, operand 20, single buffered']
    #allocation17 [shape = 's32[1]{0}', space=sflag, size = 0x4, scoped, tag = 'scoped memory for mlpvae_forward.1']
    %29 = vsyncpa [#allocation3], 0
    %30 = vsyncpa [#allocation5], 0
    %31 = vsyncpa [#allocation8], 0
    %32 = vsyncpa [#allocation11], 0
    %33 = vsyncpa [#allocation14], 0
    %34 = vsyncpa [#allocation17], 0
    // Predicated region
    $region2: #{mlpvae_forward.1} parent=1 // pred_check
      _
    $region3: #{mlpvae_forward.1} parent=1 // pred_check_branch
      %36 = sbr.rel (0) target = $region5
    $region4: #{mlpvae_forward.1} parent=1 // pred_region
      _
    $region5: #{mlpvae_forward.1} parent=1 // pred_fallthru
      _
    // Predicated region
    $region6: #{mlpvae_forward.1} parent=1 // pred_check
      _
    $region7: #{mlpvae_forward.1} parent=1 // pred_check_branch
      %38 = sbr.rel (0) target = $region9
    $region8: #{mlpvae_forward.1} parent=1 // pred_region
      _
    $region9: #{mlpvae_forward.1} parent=1 // pred_fallthru
      _
    // Predicated region
    $region10: #{mlpvae_forward.1} parent=1 // pred_check
      _
    $region11: #{mlpvae_forward.1} parent=1 // pred_check_branch
      %40 = sbr.rel (0) target = $region13
    $region12: #{mlpvae_forward.1} parent=1 // pred_region
      %42 = vsyncadd [#allocation3], 0
      %s43 = sshll.u32 %s2, 4
      %s44 = int_to_ptr.hbm [resolvable:$true] %s43
      %s45 = sshll.u32 [#allocation2], 4
      %s46 = int_to_ptr.vmem [resolvable:$true] %s45
      %51 = dma.hbm_to_vmem [thread:$0]  %s44, 4096, %s46, [#allocation3], 256, 256, 16
    $region13: #{mlpvae_forward.1} parent=1 // pred_fallthru
      _
    // Predicated region
    $region14: #{mlpvae_forward.1} parent=1 // pred_check
      _
    $region15: #{mlpvae_forward.1} parent=1 // pred_check_branch
      %53 = sbr.rel (0) target = $region17
    $region16: #{mlpvae_forward.1} parent=1 // pred_region
      _
    $region17: #{mlpvae_forward.1} parent=1 // pred_fallthru
      _
    // Predicated region
    $region18: #{mlpvae_forward.1} parent=1 // pred_check
      _
    $region19: #{mlpvae_forward.1} parent=1 // pred_check_branch
      %55 = sbr.rel (0) target = $region21
    $region20: #{mlpvae_forward.1} parent=1 // pred_region
      %57 = vsyncadd [#allocation5], 0
      %s58 = sshll.u32 %s4, 4
      %s59 = int_to_ptr.hbm [resolvable:$true] %s58
      %s60 = sshll.u32 [#allocation4], 4
      %s61 = int_to_ptr.vmem [resolvable:$true] %s60
      %66 = dma.hbm_to_vmem [thread:$0]  %s59, 8192, %s61, [#allocation5], 128, 128, 8
    $region21: #{mlpvae_forward.1} parent=1 // pred_fallthru
      _
    // Predicated region
    $region22: #{mlpvae_forward.1} parent=1 // pred_check
      _
    $region23: #{mlpvae_forward.1} parent=1 // pred_check_branch
      %68 = sbr.rel (0) target = $region25
    $region24: #{mlpvae_forward.1} parent=1 // pred_region
      _
    $region25: #{mlpvae_forward.1} parent=1 // pred_fallthru
      _
    // Predicated region
    $region26: #{mlpvae_forward.1} parent=1 // pred_check
      _
    $region27: #{mlpvae_forward.1} parent=1 // pred_check_branch
      %70 = sbr.rel (0) target = $region29
    $region28: #{mlpvae_forward.1} parent=1 // pred_region
      %72 = vsyncadd [#allocation5], 0
      %s73 = sshll.u32 %s6, 4
      %s74 = int_to_ptr.hbm [resolvable:$true] %s73
      %s75 = sshll.u32 [#allocation6], 4
      %s76 = int_to_ptr.vmem [resolvable:$true] %s75
      %81 = dma.hbm_to_vmem [thread:$0]  %s74, 2048, %s76, [#allocation5], 64, 64, 4
    $region29: #{mlpvae_forward.1} parent=1 // pred_fallthru
      _
    // Predicated region
    $region30: #{mlpvae_forward.1} parent=1 // pred_check
      _
    $region31: #{mlpvae_forward.1} parent=1 // pred_check_branch
      %83 = sbr.rel (0) target = $region33
    $region32: #{mlpvae_forward.1} parent=1 // pred_region
      _
    $region33: #{mlpvae_forward.1} parent=1 // pred_fallthru
      _
    // Predicated region
    $region34: #{mlpvae_forward.1} parent=1 // pred_check
      _
    $region35: #{mlpvae_forward.1} parent=1 // pred_check_branch
      %85 = sbr.rel (0) target = $region37
    $region36: #{mlpvae_forward.1} parent=1 // pred_region
      %87 = vsyncadd [#allocation8], 0
      %s88 = sshll.u32 %s8, 4
      %s89 = int_to_ptr.hbm [resolvable:$true] %s88
      %s90 = sshll.u32 [#allocation7], 4
      %s91 = int_to_ptr.vmem [resolvable:$true] %s90
      %96 = dma.hbm_to_vmem [thread:$0]  %s89, 1024, %s91, [#allocation8], 64, 64, 4
    $region37: #{mlpvae_forward.1} parent=1 // pred_fallthru
      _
    // Predicated region
    $region38: #{mlpvae_forward.1} parent=1 // pred_check
      _
    $region39: #{mlpvae_forward.1} parent=1 // pred_check_branch
      %98 = sbr.rel (0) target = $region41
    $region40: #{mlpvae_forward.1} parent=1 // pred_region
      _
    $region41: #{mlpvae_forward.1} parent=1 // pred_fallthru
      _
    // Predicated region
    $region42: #{mlpvae_forward.1} parent=1 // pred_check
      _
    $region43: #{mlpvae_forward.1} parent=1 // pred_check_branch
      %100 = sbr.rel (0) target = $region45
    $region44: #{mlpvae_forward.1} parent=1 // pred_region
      %102 = vsyncadd [#allocation8], 0
      %s103 = sshll.u32 %s10, 4
      %s104 = int_to_ptr.hbm [resolvable:$true] %s103
      %s105 = sshll.u32 [#allocation9], 4
      %s106 = int_to_ptr.vmem [resolvable:$true] %s105
      %111 = dma.hbm_to_vmem [thread:$0]  %s104, 4096, %s106, [#allocation8], 256, 256, 16
    $region45: #{mlpvae_forward.1} parent=1 // pred_fallthru
      _
    // Predicated region
    $region46: #{mlpvae_forward.1} parent=1 // pred_check
      _
    $region47: #{mlpvae_forward.1} parent=1 // pred_check_branch
      %113 = sbr.rel (0) target = $region49
    $region48: #{mlpvae_forward.1} parent=1 // pred_region
      _
    $region49: #{mlpvae_forward.1} parent=1 // pred_fallthru
      _
    // Predicated region
    $region50: #{mlpvae_forward.1} parent=1 // pred_check
      _
    $region51: #{mlpvae_forward.1} parent=1 // pred_check_branch
      %115 = sbr.rel (0) target = $region53
    $region52: #{mlpvae_forward.1} parent=1 // pred_region
      %117 = vsyncadd [#allocation11], 0
      %s118 = sshll.u32 %s12, 4
      %s119 = int_to_ptr.hbm [resolvable:$true] %s118
      %s120 = sshll.u32 [#allocation10], 4
      %s121 = int_to_ptr.vmem [resolvable:$true] %s120
      %126 = dma.hbm_to_vmem [thread:$0]  %s119, 1024, %s121, [#allocation11], 64, 64, 4
    $region53: #{mlpvae_forward.1} parent=1 // pred_fallthru
      _
    // Predicated region
    $region54: #{mlpvae_forward.1} parent=1 // pred_check
      _
    $region55: #{mlpvae_forward.1} parent=1 // pred_check_branch
      %128 = sbr.rel (0) target = $region57
    $region56: #{mlpvae_forward.1} parent=1 // pred_region
      _
    $region57: #{mlpvae_forward.1} parent=1 // pred_fallthru
      _
    // Predicated region
    $region58: #{mlpvae_forward.1} parent=1 // pred_check
      _
    $region59: #{mlpvae_forward.1} parent=1 // pred_check_branch
      %130 = sbr.rel (0) target = $region61
    $region60: #{mlpvae_forward.1} parent=1 // pred_region
      %132 = vsyncadd [#allocation11], 0
      %s133 = sshll.u32 %s14, 4
      %s134 = int_to_ptr.hbm [resolvable:$true] %s133
      %s135 = sshll.u32 [#allocation12], 4
      %s136 = int_to_ptr.vmem [resolvable:$true] %s135
      %141 = dma.hbm_to_vmem [thread:$0]  %s134, 1024, %s136, [#allocation11], 64, 64, 4
    $region61: #{mlpvae_forward.1} parent=1 // pred_fallthru
      _
    // Predicated region
    $region62: #{mlpvae_forward.1} parent=1 // pred_check
      _
    $region63: #{mlpvae_forward.1} parent=1 // pred_check_branch
      %143 = sbr.rel (0) target = $region65
    $region64: #{mlpvae_forward.1} parent=1 // pred_region
      _
    $region65: #{mlpvae_forward.1} parent=1 // pred_fallthru
      _
    // Predicated region
    $region66: #{mlpvae_forward.1} parent=1 // pred_check
      _
    $region67: #{mlpvae_forward.1} parent=1 // pred_check_branch
      %145 = sbr.rel (0) target = $region69
    $region68: #{mlpvae_forward.1} parent=1 // pred_region
      %147 = vsyncadd [#allocation14], 0
      %s148 = sshll.u32 %s16, 4
      %s149 = int_to_ptr.hbm [resolvable:$true] %s148
      %s150 = sshll.u32 [#allocation13], 4
      %s151 = int_to_ptr.vmem [resolvable:$true] %s150
      %156 = dma.hbm_to_vmem [thread:$0]  %s149, 2048, %s151, [#allocation14], 128, 128, 8
    $region69: #{mlpvae_forward.1} parent=1 // pred_fallthru
      _
    // Predicated region
    $region70: #{mlpvae_forward.1} parent=1 // pred_check
      _
    $region71: #{mlpvae_forward.1} parent=1 // pred_check_branch
      %158 = sbr.rel (0) target = $region73
    $region72: #{mlpvae_forward.1} parent=1 // pred_region
      _
    $region73: #{mlpvae_forward.1} parent=1 // pred_fallthru
      _
    // Predicated region
    $region74: #{mlpvae_forward.1} parent=1 // pred_check
      _
    $region75: #{mlpvae_forward.1} parent=1 // pred_check_branch
      %160 = sbr.rel (0) target = $region77
    $region76: #{mlpvae_forward.1} parent=1 // pred_region
      %162 = vsyncadd [#allocation14], 0
      %s163 = sshll.u32 %s18, 4
      %s164 = int_to_ptr.hbm [resolvable:$true] %s163
      %s165 = sshll.u32 [#allocation15], 4
      %s166 = int_to_ptr.vmem [resolvable:$true] %s165
      %171 = dma.hbm_to_vmem [thread:$0]  %s164, 8192, %s166, [#allocation14], 256, 256, 16
    $region77: #{mlpvae_forward.1} parent=1 // pred_fallthru
      _
    // Predicated region
    $region78: #{mlpvae_forward.1} parent=1 // pred_check
      _
    $region79: #{mlpvae_forward.1} parent=1 // pred_check_branch
      %173 = sbr.rel (0) target = $region81
    $region80: #{mlpvae_forward.1} parent=1 // pred_region
      _
    $region81: #{mlpvae_forward.1} parent=1 // pred_fallthru
      _
    // Predicated region
    $region82: #{mlpvae_forward.1} parent=1 // pred_check
      _
    $region83: #{mlpvae_forward.1} parent=1 // pred_check_branch
      %175 = sbr.rel (0) target = $region85
    $region84: #{mlpvae_forward.1} parent=1 // pred_region
      %177 = vsyncadd [#allocation17], 0
      %s178 = sshll.u32 %s20, 4
      %s179 = int_to_ptr.hbm [resolvable:$true] %s178
      %s180 = sshll.u32 [#allocation16], 4
      %s181 = int_to_ptr.vmem [resolvable:$true] %s180
      %186 = dma.hbm_to_vmem [thread:$0]  %s179, 4096, %s181, [#allocation17], 64, 64, 4
    $region85: #{mlpvae_forward.1} parent=1 // pred_fallthru
      _
    // Predicated region
    $region86: #{mlpvae_forward.1} parent=1 // pred_check
      _
    $region87: #{mlpvae_forward.1} parent=1 // pred_check_branch
      %188 = sbr.rel (0) target = $region89
    $region88: #{mlpvae_forward.1} parent=1 // pred_region
      _
    $region89: #{mlpvae_forward.1} parent=1 // pred_fallthru
      _
    // Predicated region
    $region90: #{mlpvae_forward.1} parent=1 // pred_check
      _
    $region91: #{mlpvae_forward.1} parent=1 // pred_check_branch
      %190 = sbr.rel (0) target = $region93
    $region92: #{mlpvae_forward.1} parent=1 // pred_region
      %192 = dma.done [#allocation3], 4096
    $region93: #{mlpvae_forward.1} parent=1 // pred_fallthru
      _
    // Predicated region
    $region94: #{mlpvae_forward.1} parent=1 // pred_check
      _
    $region95: #{mlpvae_forward.1} parent=1 // pred_check_branch
      %194 = sbr.rel (0) target = $region97
    $region96: #{mlpvae_forward.1} parent=1 // pred_region
      %196 = dma.done [#allocation5], 8192
    $region97: #{mlpvae_forward.1} parent=1 // pred_fallthru
      _
    // Predicated region
    $region98: #{mlpvae_forward.1} parent=1 // pred_check
      _
    $region99: #{mlpvae_forward.1} parent=1 // pred_check_branch
      %198 = sbr.rel (0) target = $region101
    $region100: #{mlpvae_forward.1} parent=1 // pred_region
      %200 = dma.done [#allocation5], 2048
    $region101: #{mlpvae_forward.1} parent=1 // pred_fallthru
      _
    // Predicated region
    $region102: #{mlpvae_forward.1} parent=1 // pred_check
      _
    $region103: #{mlpvae_forward.1} parent=1 // pred_check_branch
      %202 = sbr.rel (0) target = $region105
    $region104: #{mlpvae_forward.1} parent=1 // pred_region
      %204 = dma.done [#allocation8], 1024
    $region105: #{mlpvae_forward.1} parent=1 // pred_fallthru
      _
    // Predicated region
    $region106: #{mlpvae_forward.1} parent=1 // pred_check
      _
    $region107: #{mlpvae_forward.1} parent=1 // pred_check_branch
      %206 = sbr.rel (0) target = $region109
    $region108: #{mlpvae_forward.1} parent=1 // pred_region
      %208 = dma.done [#allocation8], 4096
    $region109: #{mlpvae_forward.1} parent=1 // pred_fallthru
      _
    // Predicated region
    $region110: #{mlpvae_forward.1} parent=1 // pred_check
      _
    $region111: #{mlpvae_forward.1} parent=1 // pred_check_branch
      %210 = sbr.rel (0) target = $region113
    $region112: #{mlpvae_forward.1} parent=1 // pred_region
      %212 = dma.done [#allocation11], 1024
    $region113: #{mlpvae_forward.1} parent=1 // pred_fallthru
      _
    // Predicated region
    $region114: #{mlpvae_forward.1} parent=1 // pred_check
      _
    $region115: #{mlpvae_forward.1} parent=1 // pred_check_branch
      %214 = sbr.rel (0) target = $region117
    $region116: #{mlpvae_forward.1} parent=1 // pred_region
      %216 = dma.done [#allocation11], 1024
    $region117: #{mlpvae_forward.1} parent=1 // pred_fallthru
      _
    // Predicated region
    $region118: #{mlpvae_forward.1} parent=1 // pred_check
      _
    $region119: #{mlpvae_forward.1} parent=1 // pred_check_branch
      %218 = sbr.rel (0) target = $region121
    $region120: #{mlpvae_forward.1} parent=1 // pred_region
      %220 = dma.done [#allocation14], 2048
    $region121: #{mlpvae_forward.1} parent=1 // pred_fallthru
      _
    // Predicated region
    $region122: #{mlpvae_forward.1} parent=1 // pred_check
      _
    $region123: #{mlpvae_forward.1} parent=1 // pred_check_branch
      %222 = sbr.rel (0) target = $region125
    $region124: #{mlpvae_forward.1} parent=1 // pred_region
      %224 = dma.done [#allocation14], 8192
    $region125: #{mlpvae_forward.1} parent=1 // pred_fallthru
      _
    // Predicated region
    $region126: #{mlpvae_forward.1} parent=1 // pred_check
      _
    $region127: #{mlpvae_forward.1} parent=1 // pred_check_branch
      %226 = sbr.rel (0) target = $region129
    $region128: #{mlpvae_forward.1} parent=1 // pred_region
      %228 = dma.done [#allocation17], 4096
    $region129: #{mlpvae_forward.1} parent=1 // pred_fallthru
      _
    %v229 = vld [vmem:[%s0] sm:$0xff]
    %v230 = vld [vmem:[#allocation2] sm:$0xff]
    %v231 = vld [vmem:[#allocation2 + $0x8] sm:$0xff]
    %v232 = vld [vmem:[#allocation2 + $0x10] sm:$0xff]
    %v233 = vld [vmem:[#allocation2 + $0x18] sm:$0xff]
    %v234 = vld [vmem:[#allocation2 + $0x20] sm:$0xff]
    %v235 = vld [vmem:[#allocation2 + $0x28] sm:$0xff]
    %v236 = vld [vmem:[#allocation2 + $0x30] sm:$0xff]
    %v237 = vld [vmem:[#allocation2 + $0x38] sm:$0xff]
    %v238 = vld [vmem:[#allocation2 + $0x40] sm:$0xff]
    %v239 = vld [vmem:[#allocation2 + $0x48] sm:$0xff]
    %v240 = vld [vmem:[#allocation2 + $0x50] sm:$0xff]
    %v241 = vld [vmem:[#allocation2 + $0x58] sm:$0xff]
    %v242 = vld [vmem:[#allocation2 + $0x60] sm:$0xff]
    %v243 = vld [vmem:[#allocation2 + $0x68] sm:$0xff]
    %v244 = vld [vmem:[#allocation2 + $0x70] sm:$0xff]
    %v245 = vld [vmem:[#allocation2 + $0x78] sm:$0xff]
    %v246 = vld [vmem:[#allocation2 + $0x80] sm:$0xff]
    %v247 = vld [vmem:[#allocation2 + $0x88] sm:$0xff]
    %v248 = vld [vmem:[#allocation2 + $0x90] sm:$0xff]
    %v249 = vld [vmem:[#allocation2 + $0x98] sm:$0xff]
    %v250 = vld [vmem:[#allocation2 + $0xa0] sm:$0xff]
    %v251 = vld [vmem:[#allocation2 + $0xa8] sm:$0xff]
    %v252 = vld [vmem:[#allocation2 + $0xb0] sm:$0xff]
    %v253 = vld [vmem:[#allocation2 + $0xb8] sm:$0xff]
    %v254 = vld [vmem:[#allocation2 + $0xc0] sm:$0xff]
    %v255 = vld [vmem:[#allocation2 + $0xc8] sm:$0xff]
    %v256 = vld [vmem:[#allocation2 + $0xd0] sm:$0xff]
    %v257 = vld [vmem:[#allocation2 + $0xd8] sm:$0xff]
    %v258 = vld [vmem:[#allocation2 + $0xe0] sm:$0xff]
    %v259 = vld [vmem:[#allocation2 + $0xe8] sm:$0xff]
    %v260 = vld [vmem:[#allocation2 + $0xf0] sm:$0xff]
    %v261 = vld [vmem:[#allocation2 + $0xf8] sm:$0xff]
    %v262 = vld [vmem:[%s3] sm:$0xf]
    %v264 = vperm.slane %v262, 0
    %v265 = vperm.slane %v262, 1
    %v266 = vperm.slane %v262, 2
    %v267 = vperm.slane %v262, 3
    %v304 = vunpack.c.l.b16 %v230
    %v305 = vunpack.c.h.b16 %v230
    %v306 = vunpack.c.l.b16 %v231
    %v307 = vunpack.c.h.b16 %v231
    %v308 = vunpack.c.l.b16 %v232
    %v309 = vunpack.c.h.b16 %v232
    %v310 = vunpack.c.l.b16 %v233
    %v311 = vunpack.c.h.b16 %v233
    %v312 = vunpack.c.l.b16 %v234
    %v313 = vunpack.c.h.b16 %v234
    %v314 = vunpack.c.l.b16 %v235
    %v315 = vunpack.c.h.b16 %v235
    %v316 = vunpack.c.l.b16 %v236
    %v317 = vunpack.c.h.b16 %v236
    %v318 = vunpack.c.l.b16 %v237
    %v319 = vunpack.c.h.b16 %v237
    %v320 = vunpack.c.l.b16 %v238
    %v321 = vunpack.c.h.b16 %v238
    %v322 = vunpack.c.l.b16 %v239
    %v323 = vunpack.c.h.b16 %v239
    %v324 = vunpack.c.l.b16 %v240
    %v325 = vunpack.c.h.b16 %v240
    %v326 = vunpack.c.l.b16 %v241
    %v327 = vunpack.c.h.b16 %v241
    %v328 = vunpack.c.l.b16 %v242
    %v329 = vunpack.c.h.b16 %v242
    %v330 = vunpack.c.l.b16 %v243
    %v331 = vunpack.c.h.b16 %v243
    %v332 = vunpack.c.l.b16 %v244
    %v333 = vunpack.c.h.b16 %v244
    %v334 = vunpack.c.l.b16 %v245
    %v335 = vunpack.c.h.b16 %v245
    %v336 = vunpack.c.l.b16 %v246
    %v337 = vunpack.c.h.b16 %v246
    %v338 = vunpack.c.l.b16 %v247
    %v339 = vunpack.c.h.b16 %v247
    %v340 = vunpack.c.l.b16 %v248
    %v341 = vunpack.c.h.b16 %v248
    %v342 = vunpack.c.l.b16 %v249
    %v343 = vunpack.c.h.b16 %v249
    %v344 = vunpack.c.l.b16 %v250
    %v345 = vunpack.c.h.b16 %v250
    %v346 = vunpack.c.l.b16 %v251
    %v347 = vunpack.c.h.b16 %v251
    %v348 = vunpack.c.l.b16 %v252
    %v349 = vunpack.c.h.b16 %v252
    %v350 = vunpack.c.l.b16 %v253
    %v351 = vunpack.c.h.b16 %v253
    %v352 = vunpack.c.l.b16 %v254
    %v353 = vunpack.c.h.b16 %v254
    %v354 = vunpack.c.l.b16 %v255
    %v355 = vunpack.c.h.b16 %v255
    %v356 = vunpack.c.l.b16 %v256
    %v357 = vunpack.c.h.b16 %v256
    %v358 = vunpack.c.l.b16 %v257
    %v359 = vunpack.c.h.b16 %v257
    %v360 = vunpack.c.l.b16 %v258
    %v361 = vunpack.c.h.b16 %v258
    %v362 = vunpack.c.l.b16 %v259
    %v363 = vunpack.c.h.b16 %v259
    %v364 = vunpack.c.l.b16 %v260
    %v365 = vunpack.c.h.b16 %v260
    %v366 = vunpack.c.l.b16 %v261
    %v367 = vunpack.c.h.b16 %v261
    %v368 = vpack.c.b16 %v308, %v304
    %v369 = vpack.c.b16 %v309, %v305
    %v370 = vpack.c.b16 %v310, %v306
    %v371 = vpack.c.b16 %v311, %v307
    %v372 = vpack.c.b16 %v316, %v312
    %v373 = vpack.c.b16 %v317, %v313
    %v374 = vpack.c.b16 %v318, %v314
    %v375 = vpack.c.b16 %v319, %v315
    %v376 = vpack.c.b16 %v324, %v320
    %v377 = vpack.c.b16 %v325, %v321
    %v378 = vpack.c.b16 %v326, %v322
    %v379 = vpack.c.b16 %v327, %v323
    %v380 = vpack.c.b16 %v332, %v328
    %v381 = vpack.c.b16 %v333, %v329
    %v382 = vpack.c.b16 %v334, %v330
    %v383 = vpack.c.b16 %v335, %v331
    %v384 = vpack.c.b16 %v340, %v336
    %v385 = vpack.c.b16 %v341, %v337
    %v386 = vpack.c.b16 %v342, %v338
    %v387 = vpack.c.b16 %v343, %v339
    %v388 = vpack.c.b16 %v348, %v344
    %v389 = vpack.c.b16 %v349, %v345
    %v390 = vpack.c.b16 %v350, %v346
    %v391 = vpack.c.b16 %v351, %v347
    %v392 = vpack.c.b16 %v356, %v352
    %v393 = vpack.c.b16 %v357, %v353
    %v394 = vpack.c.b16 %v358, %v354
    %v395 = vpack.c.b16 %v359, %v355
    %v396 = vpack.c.b16 %v364, %v360
    %v397 = vpack.c.b16 %v365, %v361
    %v398 = vpack.c.b16 %v366, %v362
    %v399 = vpack.c.b16 %v367, %v363
    %432 = vmatpush.bf16.msra.mxu0 %v396
    %433 = vmatpush.bf16.msra.mxu0 %v392
    %434 = vmatpush.bf16.msra.mxu0 %v388
    %435 = vmatpush.bf16.msra.mxu0 %v384
    %436 = vmatpush.bf16.msra.mxu0 %v380
    %437 = vmatpush.bf16.msra.mxu0 %v376
    %438 = vmatpush.bf16.msra.mxu0 %v372
    %439 = vmatpush.bf16.msra.mxu0 %v368
    %440 = vmatmul.f32.gmra.mxu0 %v229
    %v441 = vpop.f32.mrf.mxu0
    %v442 = vadd.f32 %v264, %v441
    %443 = vdwg.mxu0
    %444 = vmatpush.bf16.msra.mxu0 %v397
    %445 = vmatpush.bf16.msra.mxu0 %v393
    %446 = vmatpush.bf16.msra.mxu0 %v389
    %447 = vmatpush.bf16.msra.mxu0 %v385
    %448 = vmatpush.bf16.msra.mxu0 %v381
    %449 = vmatpush.bf16.msra.mxu0 %v377
    %450 = vmatpush.bf16.msra.mxu0 %v373
    %451 = vmatpush.bf16.msra.mxu0 %v369
    %452 = vmatmul.f32.gmra.mxu0 %v229
    %v453 = vpop.f32.mrf.mxu0
    %v454 = vadd.f32 %v265, %v453
    %455 = vdwg.mxu0
    %456 = vmatpush.bf16.msra.mxu0 %v398
    %457 = vmatpush.bf16.msra.mxu0 %v394
    %458 = vmatpush.bf16.msra.mxu0 %v390
    %459 = vmatpush.bf16.msra.mxu0 %v386
    %460 = vmatpush.bf16.msra.mxu0 %v382
    %461 = vmatpush.bf16.msra.mxu0 %v378
    %462 = vmatpush.bf16.msra.mxu0 %v374
    %463 = vmatpush.bf16.msra.mxu0 %v370
    %464 = vmatmul.f32.gmra.mxu0 %v229
    %v465 = vpop.f32.mrf.mxu0
    %v466 = vadd.f32 %v266, %v465
    %467 = vdwg.mxu0
    %468 = vmatpush.bf16.msra.mxu0 %v399
    %469 = vmatpush.bf16.msra.mxu0 %v395
    %470 = vmatpush.bf16.msra.mxu0 %v391
    %471 = vmatpush.bf16.msra.mxu0 %v387
    %472 = vmatpush.bf16.msra.mxu0 %v383
    %473 = vmatpush.bf16.msra.mxu0 %v379
    %474 = vmatpush.bf16.msra.mxu0 %v375
    %475 = vmatpush.bf16.msra.mxu0 %v371
    %476 = vmatmul.f32.gmra.mxu0 %v229
    %v477 = vpop.f32.mrf.mxu0
    %v478 = vadd.f32 %v267, %v477
    %479 = vdwg.mxu0
    %v480 = vmax.f32 %v442, 0.0
    %v481 = vmax.f32 %v454, 0.0
    %v482 = vmax.f32 %v466, 0.0
    %v483 = vmax.f32 %v478, 0.0
    %v484 = vld [vmem:[#allocation4] sm:$0xff]
    %v485 = vld [vmem:[#allocation4 + $0x8] sm:$0xff]
    %v486 = vld [vmem:[#allocation4 + $0x10] sm:$0xff]
    %v487 = vld [vmem:[#allocation4 + $0x18] sm:$0xff]
    %v488 = vld [vmem:[#allocation4 + $0x20] sm:$0xff]
    %v489 = vld [vmem:[#allocation4 + $0x28] sm:$0xff]
    %v490 = vld [vmem:[#allocation4 + $0x30] sm:$0xff]
    %v491 = vld [vmem:[#allocation4 + $0x38] sm:$0xff]
    %v492 = vld [vmem:[#allocation4 + $0x40] sm:$0xff]
    %v493 = vld [vmem:[#allocation4 + $0x48] sm:$0xff]
    %v494 = vld [vmem:[#allocation4 + $0x50] sm:$0xff]
    %v495 = vld [vmem:[#allocation4 + $0x58] sm:$0xff]
    %v496 = vld [vmem:[#allocation4 + $0x60] sm:$0xff]
    %v497 = vld [vmem:[#allocation4 + $0x68] sm:$0xff]
    %v498 = vld [vmem:[#allocation4 + $0x70] sm:$0xff]
    %v499 = vld [vmem:[#allocation4 + $0x78] sm:$0xff]
    %v500 = vld [vmem:[#allocation4 + $0x80] sm:$0xff]
    %v501 = vld [vmem:[#allocation4 + $0x88] sm:$0xff]
    %v502 = vld [vmem:[#allocation4 + $0x90] sm:$0xff]
    %v503 = vld [vmem:[#allocation4 + $0x98] sm:$0xff]
    %v504 = vld [vmem:[#allocation4 + $0xa0] sm:$0xff]
    %v505 = vld [vmem:[#allocation4 + $0xa8] sm:$0xff]
    %v506 = vld [vmem:[#allocation4 + $0xb0] sm:$0xff]
    %v507 = vld [vmem:[#allocation4 + $0xb8] sm:$0xff]
    %v508 = vld [vmem:[#allocation4 + $0xc0] sm:$0xff]
    %v509 = vld [vmem:[#allocation4 + $0xc8] sm:$0xff]
    %v510 = vld [vmem:[#allocation4 + $0xd0] sm:$0xff]
    %v511 = vld [vmem:[#allocation4 + $0xd8] sm:$0xff]
    %v512 = vld [vmem:[#allocation4 + $0xe0] sm:$0xff]
    %v513 = vld [vmem:[#allocation4 + $0xe8] sm:$0xff]
    %v514 = vld [vmem:[#allocation4 + $0xf0] sm:$0xff]
    %v515 = vld [vmem:[#allocation4 + $0xf8] sm:$0xff]
    %v516 = vld [vmem:[#allocation4 + $0x100] sm:$0xff]
    %v517 = vld [vmem:[#allocation4 + $0x108] sm:$0xff]
    %v518 = vld [vmem:[#allocation4 + $0x110] sm:$0xff]
    %v519 = vld [vmem:[#allocation4 + $0x118] sm:$0xff]
    %v520 = vld [vmem:[#allocation4 + $0x120] sm:$0xff]
    %v521 = vld [vmem:[#allocation4 + $0x128] sm:$0xff]
    %v522 = vld [vmem:[#allocation4 + $0x130] sm:$0xff]
    %v523 = vld [vmem:[#allocation4 + $0x138] sm:$0xff]
    %v524 = vld [vmem:[#allocation4 + $0x140] sm:$0xff]
    %v525 = vld [vmem:[#allocation4 + $0x148] sm:$0xff]
    %v526 = vld [vmem:[#allocation4 + $0x150] sm:$0xff]
    %v527 = vld [vmem:[#allocation4 + $0x158] sm:$0xff]
    %v528 = vld [vmem:[#allocation4 + $0x160] sm:$0xff]
    %v529 = vld [vmem:[#allocation4 + $0x168] sm:$0xff]
    %v530 = vld [vmem:[#allocation4 + $0x170] sm:$0xff]
    %v531 = vld [vmem:[#allocation4 + $0x178] sm:$0xff]
    %v532 = vld [vmem:[#allocation4 + $0x180] sm:$0xff]
    %v533 = vld [vmem:[#allocation4 + $0x188] sm:$0xff]
    %v534 = vld [vmem:[#allocation4 + $0x190] sm:$0xff]
    %v535 = vld [vmem:[#allocation4 + $0x198] sm:$0xff]
    %v536 = vld [vmem:[#allocation4 + $0x1a0] sm:$0xff]
    %v537 = vld [vmem:[#allocation4 + $0x1a8] sm:$0xff]
    %v538 = vld [vmem:[#allocation4 + $0x1b0] sm:$0xff]
    %v539 = vld [vmem:[#allocation4 + $0x1b8] sm:$0xff]
    %v540 = vld [vmem:[#allocation4 + $0x1c0] sm:$0xff]
    %v541 = vld [vmem:[#allocation4 + $0x1c8] sm:$0xff]
    %v542 = vld [vmem:[#allocation4 + $0x1d0] sm:$0xff]
    %v543 = vld [vmem:[#allocation4 + $0x1d8] sm:$0xff]
    %v544 = vld [vmem:[#allocation4 + $0x1e0] sm:$0xff]
    %v545 = vld [vmem:[#allocation4 + $0x1e8] sm:$0xff]
    %v546 = vld [vmem:[#allocation4 + $0x1f0] sm:$0xff]
    %v547 = vld [vmem:[#allocation4 + $0x1f8] sm:$0xff]
    %v548 = vld [vmem:[%s5] sm:$0x3]
    %v550 = vperm.slane %v548, 0
    %v551 = vperm.slane %v548, 1
    %v618 = vunpack.c.l.b16 %v484
    %v619 = vunpack.c.h.b16 %v484
    %v620 = vunpack.c.l.b16 %v485
    %v621 = vunpack.c.h.b16 %v485
    %v622 = vunpack.c.l.b16 %v486
    %v623 = vunpack.c.h.b16 %v486
    %v624 = vunpack.c.l.b16 %v487
    %v625 = vunpack.c.h.b16 %v487
    %v626 = vunpack.c.l.b16 %v488
    %v627 = vunpack.c.h.b16 %v488
    %v628 = vunpack.c.l.b16 %v489
    %v629 = vunpack.c.h.b16 %v489
    %v630 = vunpack.c.l.b16 %v490
    %v631 = vunpack.c.h.b16 %v490
    %v632 = vunpack.c.l.b16 %v491
    %v633 = vunpack.c.h.b16 %v491
    %v634 = vunpack.c.l.b16 %v492
    %v635 = vunpack.c.h.b16 %v492
    %v636 = vunpack.c.l.b16 %v493
    %v637 = vunpack.c.h.b16 %v493
    %v638 = vunpack.c.l.b16 %v494
    %v639 = vunpack.c.h.b16 %v494
    %v640 = vunpack.c.l.b16 %v495
    %v641 = vunpack.c.h.b16 %v495
    %v642 = vunpack.c.l.b16 %v496
    %v643 = vunpack.c.h.b16 %v496
    %v644 = vunpack.c.l.b16 %v497
    %v645 = vunpack.c.h.b16 %v497
    %v646 = vunpack.c.l.b16 %v498
    %v647 = vunpack.c.h.b16 %v498
    %v648 = vunpack.c.l.b16 %v499
    %v649 = vunpack.c.h.b16 %v499
    %v650 = vunpack.c.l.b16 %v500
    %v651 = vunpack.c.h.b16 %v500
    %v652 = vunpack.c.l.b16 %v501
    %v653 = vunpack.c.h.b16 %v501
    %v654 = vunpack.c.l.b16 %v502
    %v655 = vunpack.c.h.b16 %v502
    %v656 = vunpack.c.l.b16 %v503
    %v657 = vunpack.c.h.b16 %v503
    %v658 = vunpack.c.l.b16 %v504
    %v659 = vunpack.c.h.b16 %v504
    %v660 = vunpack.c.l.b16 %v505
    %v661 = vunpack.c.h.b16 %v505
    %v662 = vunpack.c.l.b16 %v506
    %v663 = vunpack.c.h.b16 %v506
    %v664 = vunpack.c.l.b16 %v507
    %v665 = vunpack.c.h.b16 %v507
    %v666 = vunpack.c.l.b16 %v508
    %v667 = vunpack.c.h.b16 %v508
    %v668 = vunpack.c.l.b16 %v509
    %v669 = vunpack.c.h.b16 %v509
    %v670 = vunpack.c.l.b16 %v510
    %v671 = vunpack.c.h.b16 %v510
    %v672 = vunpack.c.l.b16 %v511
    %v673 = vunpack.c.h.b16 %v511
    %v674 = vunpack.c.l.b16 %v512
    %v675 = vunpack.c.h.b16 %v512
    %v676 = vunpack.c.l.b16 %v513
    %v677 = vunpack.c.h.b16 %v513
    %v678 = vunpack.c.l.b16 %v514
    %v679 = vunpack.c.h.b16 %v514
    %v680 = vunpack.c.l.b16 %v515
    %v681 = vunpack.c.h.b16 %v515
    %v682 = vunpack.c.l.b16 %v516
    %v683 = vunpack.c.h.b16 %v516
    %v684 = vunpack.c.l.b16 %v517
    %v685 = vunpack.c.h.b16 %v517
    %v686 = vunpack.c.l.b16 %v518
    %v687 = vunpack.c.h.b16 %v518
    %v688 = vunpack.c.l.b16 %v519
    %v689 = vunpack.c.h.b16 %v519
    %v690 = vunpack.c.l.b16 %v520
    %v691 = vunpack.c.h.b16 %v520
    %v692 = vunpack.c.l.b16 %v521
    %v693 = vunpack.c.h.b16 %v521
    %v694 = vunpack.c.l.b16 %v522
    %v695 = vunpack.c.h.b16 %v522
    %v696 = vunpack.c.l.b16 %v523
    %v697 = vunpack.c.h.b16 %v523
    %v698 = vunpack.c.l.b16 %v524
    %v699 = vunpack.c.h.b16 %v524
    %v700 = vunpack.c.l.b16 %v525
    %v701 = vunpack.c.h.b16 %v525
    %v702 = vunpack.c.l.b16 %v526
    %v703 = vunpack.c.h.b16 %v526
    %v704 = vunpack.c.l.b16 %v527
    %v705 = vunpack.c.h.b16 %v527
    %v706 = vunpack.c.l.b16 %v528
    %v707 = vunpack.c.h.b16 %v528
    %v708 = vunpack.c.l.b16 %v529
    %v709 = vunpack.c.h.b16 %v529
    %v710 = vunpack.c.l.b16 %v530
    %v711 = vunpack.c.h.b16 %v530
    %v712 = vunpack.c.l.b16 %v531
    %v713 = vunpack.c.h.b16 %v531
    %v714 = vunpack.c.l.b16 %v532
    %v715 = vunpack.c.h.b16 %v532
    %v716 = vunpack.c.l.b16 %v533
    %v717 = vunpack.c.h.b16 %v533
    %v718 = vunpack.c.l.b16 %v534
    %v719 = vunpack.c.h.b16 %v534
    %v720 = vunpack.c.l.b16 %v535
    %v721 = vunpack.c.h.b16 %v535
    %v722 = vunpack.c.l.b16 %v536
    %v723 = vunpack.c.h.b16 %v536
    %v724 = vunpack.c.l.b16 %v537
    %v725 = vunpack.c.h.b16 %v537
    %v726 = vunpack.c.l.b16 %v538
    %v727 = vunpack.c.h.b16 %v538
    %v728 = vunpack.c.l.b16 %v539
    %v729 = vunpack.c.h.b16 %v539
    %v730 = vunpack.c.l.b16 %v540
    %v731 = vunpack.c.h.b16 %v540
    %v732 = vunpack.c.l.b16 %v541
    %v733 = vunpack.c.h.b16 %v541
    %v734 = vunpack.c.l.b16 %v542
    %v735 = vunpack.c.h.b16 %v542
    %v736 = vunpack.c.l.b16 %v543
    %v737 = vunpack.c.h.b16 %v543
    %v738 = vunpack.c.l.b16 %v544
    %v739 = vunpack.c.h.b16 %v544
    %v740 = vunpack.c.l.b16 %v545
    %v741 = vunpack.c.h.b16 %v545
    %v742 = vunpack.c.l.b16 %v546
    %v743 = vunpack.c.h.b16 %v546
    %v744 = vunpack.c.l.b16 %v547
    %v745 = vunpack.c.h.b16 %v547
    %v746 = vpack.c.b16 %v620, %v618
    %v747 = vpack.c.b16 %v621, %v619
    %v748 = vpack.c.b16 %v624, %v622
    %v749 = vpack.c.b16 %v625, %v623
    %v750 = vpack.c.b16 %v628, %v626
    %v751 = vpack.c.b16 %v629, %v627
    %v752 = vpack.c.b16 %v632, %v630
    %v753 = vpack.c.b16 %v633, %v631
    %v754 = vpack.c.b16 %v636, %v634
    %v755 = vpack.c.b16 %v637, %v635
    %v756 = vpack.c.b16 %v640, %v638
    %v757 = vpack.c.b16 %v641, %v639
    %v758 = vpack.c.b16 %v644, %v642
    %v759 = vpack.c.b16 %v645, %v643
    %v760 = vpack.c.b16 %v648, %v646
    %v761 = vpack.c.b16 %v649, %v647
    %v762 = vpack.c.b16 %v652, %v650
    %v763 = vpack.c.b16 %v653, %v651
    %v764 = vpack.c.b16 %v656, %v654
    %v765 = vpack.c.b16 %v657, %v655
    %v766 = vpack.c.b16 %v660, %v658
    %v767 = vpack.c.b16 %v661, %v659
    %v768 = vpack.c.b16 %v664, %v662
    %v769 = vpack.c.b16 %v665, %v663
    %v770 = vpack.c.b16 %v668, %v666
    %v771 = vpack.c.b16 %v669, %v667
    %v772 = vpack.c.b16 %v672, %v670
    %v773 = vpack.c.b16 %v673, %v671
    %v774 = vpack.c.b16 %v676, %v674
    %v775 = vpack.c.b16 %v677, %v675
    %v776 = vpack.c.b16 %v680, %v678
    %v777 = vpack.c.b16 %v681, %v679
    %v778 = vpack.c.b16 %v684, %v682
    %v779 = vpack.c.b16 %v685, %v683
    %v780 = vpack.c.b16 %v688, %v686
    %v781 = vpack.c.b16 %v689, %v687
    %v782 = vpack.c.b16 %v692, %v690
    %v783 = vpack.c.b16 %v693, %v691
    %v784 = vpack.c.b16 %v696, %v694
    %v785 = vpack.c.b16 %v697, %v695
    %v786 = vpack.c.b16 %v700, %v698
    %v787 = vpack.c.b16 %v701, %v699
    %v788 = vpack.c.b16 %v704, %v702
    %v789 = vpack.c.b16 %v705, %v703
    %v790 = vpack.c.b16 %v708, %v706
    %v791 = vpack.c.b16 %v709, %v707
    %v792 = vpack.c.b16 %v712, %v710
    %v793 = vpack.c.b16 %v713, %v711
    %v794 = vpack.c.b16 %v716, %v714
    %v795 = vpack.c.b16 %v717, %v715
    %v796 = vpack.c.b16 %v720, %v718
    %v797 = vpack.c.b16 %v721, %v719
    %v798 = vpack.c.b16 %v724, %v722
    %v799 = vpack.c.b16 %v725, %v723
    %v800 = vpack.c.b16 %v728, %v726
    %v801 = vpack.c.b16 %v729, %v727
    %v802 = vpack.c.b16 %v732, %v730
    %v803 = vpack.c.b16 %v733, %v731
    %v804 = vpack.c.b16 %v736, %v734
    %v805 = vpack.c.b16 %v737, %v735
    %v806 = vpack.c.b16 %v740, %v738
    %v807 = vpack.c.b16 %v741, %v739
    %v808 = vpack.c.b16 %v744, %v742
    %v809 = vpack.c.b16 %v745, %v743
    %874 = vmatpush.bf16.msra.mxu0 %v760
    %875 = vmatpush.bf16.msra.mxu0 %v758
    %876 = vmatpush.bf16.msra.mxu0 %v756
    %877 = vmatpush.bf16.msra.mxu0 %v754
    %878 = vmatpush.bf16.msra.mxu0 %v752
    %879 = vmatpush.bf16.msra.mxu0 %v750
    %880 = vmatpush.bf16.msra.mxu0 %v748
    %881 = vmatpush.bf16.msra.mxu0 %v746
    %882 = vmatmul.f32.gmra.mxu0 %v480
    %v883 = vpop.f32.mrf.mxu0
    %v884 = vadd.f32 %v550, %v883
    %885 = vdwg.mxu0
    %886 = vmatpush.bf16.msra.mxu0 %v776
    %887 = vmatpush.bf16.msra.mxu0 %v774
    %888 = vmatpush.bf16.msra.mxu0 %v772
    %889 = vmatpush.bf16.msra.mxu0 %v770
    %890 = vmatpush.bf16.msra.mxu0 %v768
    %891 = vmatpush.bf16.msra.mxu0 %v766
    %892 = vmatpush.bf16.msra.mxu0 %v764
    %893 = vmatpush.bf16.msra.mxu0 %v762
    %894 = vmatmul.f32.gmra.mxu0 %v481
    %v895 = vpop.f32.mrf.mxu0
    %v896 = vadd.f32 %v884, %v895
    %897 = vdwg.mxu0
    %898 = vmatpush.bf16.msra.mxu0 %v792
    %899 = vmatpush.bf16.msra.mxu0 %v790
    %900 = vmatpush.bf16.msra.mxu0 %v788
    %901 = vmatpush.bf16.msra.mxu0 %v786
    %902 = vmatpush.bf16.msra.mxu0 %v784
    %903 = vmatpush.bf16.msra.mxu0 %v782
    %904 = vmatpush.bf16.msra.mxu0 %v780
    %905 = vmatpush.bf16.msra.mxu0 %v778
    %906 = vmatmul.f32.gmra.mxu0 %v482
    %v907 = vpop.f32.mrf.mxu0
    %v908 = vadd.f32 %v896, %v907
    %909 = vdwg.mxu0
    %910 = vmatpush.bf16.msra.mxu0 %v808
    %911 = vmatpush.bf16.msra.mxu0 %v806
    %912 = vmatpush.bf16.msra.mxu0 %v804
    %913 = vmatpush.bf16.msra.mxu0 %v802
    %914 = vmatpush.bf16.msra.mxu0 %v800
    %915 = vmatpush.bf16.msra.mxu0 %v798
    %916 = vmatpush.bf16.msra.mxu0 %v796
    %917 = vmatpush.bf16.msra.mxu0 %v794
    %918 = vmatmul.f32.gmra.mxu0 %v483
    %v919 = vpop.f32.mrf.mxu0
    %v920 = vadd.f32 %v908, %v919
    %921 = vdwg.mxu0
    %922 = vmatpush.bf16.msra.mxu0 %v761
    %923 = vmatpush.bf16.msra.mxu0 %v759
    %924 = vmatpush.bf16.msra.mxu0 %v757
    %925 = vmatpush.bf16.msra.mxu0 %v755
    %926 = vmatpush.bf16.msra.mxu0 %v753
    %927 = vmatpush.bf16.msra.mxu0 %v751
    %928 = vmatpush.bf16.msra.mxu0 %v749
    %929 = vmatpush.bf16.msra.mxu0 %v747
    %930 = vmatmul.f32.gmra.mxu0 %v480
    %v931 = vpop.f32.mrf.mxu0
    %v932 = vadd.f32 %v551, %v931
    %933 = vdwg.mxu0
    %934 = vmatpush.bf16.msra.mxu0 %v777
    %935 = vmatpush.bf16.msra.mxu0 %v775
    %936 = vmatpush.bf16.msra.mxu0 %v773
    %937 = vmatpush.bf16.msra.mxu0 %v771
    %938 = vmatpush.bf16.msra.mxu0 %v769
    %939 = vmatpush.bf16.msra.mxu0 %v767
    %940 = vmatpush.bf16.msra.mxu0 %v765
    %941 = vmatpush.bf16.msra.mxu0 %v763
    %942 = vmatmul.f32.gmra.mxu0 %v481
    %v943 = vpop.f32.mrf.mxu0
    %v944 = vadd.f32 %v932, %v943
    %945 = vdwg.mxu0
    %946 = vmatpush.bf16.msra.mxu0 %v793
    %947 = vmatpush.bf16.msra.mxu0 %v791
    %948 = vmatpush.bf16.msra.mxu0 %v789
    %949 = vmatpush.bf16.msra.mxu0 %v787
    %950 = vmatpush.bf16.msra.mxu0 %v785
    %951 = vmatpush.bf16.msra.mxu0 %v783
    %952 = vmatpush.bf16.msra.mxu0 %v781
    %953 = vmatpush.bf16.msra.mxu0 %v779
    %954 = vmatmul.f32.gmra.mxu0 %v482
    %v955 = vpop.f32.mrf.mxu0
    %v956 = vadd.f32 %v944, %v955
    %957 = vdwg.mxu0
    %958 = vmatpush.bf16.msra.mxu0 %v809
    %959 = vmatpush.bf16.msra.mxu0 %v807
    %960 = vmatpush.bf16.msra.mxu0 %v805
    %961 = vmatpush.bf16.msra.mxu0 %v803
    %962 = vmatpush.bf16.msra.mxu0 %v801
    %963 = vmatpush.bf16.msra.mxu0 %v799
    %964 = vmatpush.bf16.msra.mxu0 %v797
    %965 = vmatpush.bf16.msra.mxu0 %v795
    %966 = vmatmul.f32.gmra.mxu0 %v483
    %v967 = vpop.f32.mrf.mxu0
    %v968 = vadd.f32 %v956, %v967
    %969 = vdwg.mxu0
    %v970 = vmax.f32 %v920, 0.0
    %v971 = vmax.f32 %v968, 0.0
    %v972 = vld [vmem:[#allocation6] sm:$0xf]
    %v973 = vld [vmem:[#allocation6 + $0x4] sm:$0xf]
    %v974 = vld [vmem:[#allocation6 + $0x8] sm:$0xf]
    %v975 = vld [vmem:[#allocation6 + $0xc] sm:$0xf]
    %v976 = vld [vmem:[#allocation6 + $0x10] sm:$0xf]
    %v977 = vld [vmem:[#allocation6 + $0x14] sm:$0xf]
    %v978 = vld [vmem:[#allocation6 + $0x18] sm:$0xf]
    %v979 = vld [vmem:[#allocation6 + $0x1c] sm:$0xf]
    %v980 = vld [vmem:[#allocation6 + $0x20] sm:$0xf]
    %v981 = vld [vmem:[#allocation6 + $0x24] sm:$0xf]
    %v982 = vld [vmem:[#allocation6 + $0x28] sm:$0xf]
    %v983 = vld [vmem:[#allocation6 + $0x2c] sm:$0xf]
    %v984 = vld [vmem:[#allocation6 + $0x30] sm:$0xf]
    %v985 = vld [vmem:[#allocation6 + $0x34] sm:$0xf]
    %v986 = vld [vmem:[#allocation6 + $0x38] sm:$0xf]
    %v987 = vld [vmem:[#allocation6 + $0x3c] sm:$0xf]
    %v988 = vld [vmem:[#allocation6 + $0x40] sm:$0xf]
    %v989 = vld [vmem:[#allocation6 + $0x44] sm:$0xf]
    %v990 = vld [vmem:[#allocation6 + $0x48] sm:$0xf]
    %v991 = vld [vmem:[#allocation6 + $0x4c] sm:$0xf]
    %v992 = vld [vmem:[#allocation6 + $0x50] sm:$0xf]
    %v993 = vld [vmem:[#allocation6 + $0x54] sm:$0xf]
    %v994 = vld [vmem:[#allocation6 + $0x58] sm:$0xf]
    %v995 = vld [vmem:[#allocation6 + $0x5c] sm:$0xf]
    %v996 = vld [vmem:[#allocation6 + $0x60] sm:$0xf]
    %v997 = vld [vmem:[#allocation6 + $0x64] sm:$0xf]
    %v998 = vld [vmem:[#allocation6 + $0x68] sm:$0xf]
    %v999 = vld [vmem:[#allocation6 + $0x6c] sm:$0xf]
    %v1000 = vld [vmem:[#allocation6 + $0x70] sm:$0xf]
    %v1001 = vld [vmem:[#allocation6 + $0x74] sm:$0xf]
    %v1002 = vld [vmem:[#allocation6 + $0x78] sm:$0xf]
    %v1003 = vld [vmem:[#allocation6 + $0x7c] sm:$0xf]
    %v1004 = vld [vmem:[%s7] sm:$0x1]
    %v1006 = vperm.slane %v1004, 0
    %v1040 = vunpack.c.l.b16 %v972
    %v1041 = vunpack.c.l.b16 %v973
    %v1042 = vunpack.c.l.b16 %v974
    %v1043 = vunpack.c.l.b16 %v975
    %v1044 = vunpack.c.l.b16 %v976
    %v1045 = vunpack.c.l.b16 %v977
    %v1046 = vunpack.c.l.b16 %v978
    %v1047 = vunpack.c.l.b16 %v979
    %v1048 = vunpack.c.l.b16 %v980
    %v1049 = vunpack.c.l.b16 %v981
    %v1050 = vunpack.c.l.b16 %v982
    %v1051 = vunpack.c.l.b16 %v983
    %v1052 = vunpack.c.l.b16 %v984
    %v1053 = vunpack.c.l.b16 %v985
    %v1054 = vunpack.c.l.b16 %v986
    %v1055 = vunpack.c.l.b16 %v987
    %v1056 = vunpack.c.l.b16 %v988
    %v1057 = vunpack.c.l.b16 %v989
    %v1058 = vunpack.c.l.b16 %v990
    %v1059 = vunpack.c.l.b16 %v991
    %v1060 = vunpack.c.l.b16 %v992
    %v1061 = vunpack.c.l.b16 %v993
    %v1062 = vunpack.c.l.b16 %v994
    %v1063 = vunpack.c.l.b16 %v995
    %v1064 = vunpack.c.l.b16 %v996
    %v1065 = vunpack.c.l.b16 %v997
    %v1066 = vunpack.c.l.b16 %v998
    %v1067 = vunpack.c.l.b16 %v999
    %v1068 = vunpack.c.l.b16 %v1000
    %v1069 = vunpack.c.l.b16 %v1001
    %v1070 = vunpack.c.l.b16 %v1002
    %v1071 = vunpack.c.l.b16 %v1003
    %v1072 = vpack.c.b16 %v1041, %v1040
    %v1073 = vpack.c.b16 %v1043, %v1042
    %v1074 = vpack.c.b16 %v1045, %v1044
    %v1075 = vpack.c.b16 %v1047, %v1046
    %v1076 = vpack.c.b16 %v1049, %v1048
    %v1077 = vpack.c.b16 %v1051, %v1050
    %v1078 = vpack.c.b16 %v1053, %v1052
    %v1079 = vpack.c.b16 %v1055, %v1054
    %v1080 = vpack.c.b16 %v1057, %v1056
    %v1081 = vpack.c.b16 %v1059, %v1058
    %v1082 = vpack.c.b16 %v1061, %v1060
    %v1083 = vpack.c.b16 %v1063, %v1062
    %v1084 = vpack.c.b16 %v1065, %v1064
    %v1085 = vpack.c.b16 %v1067, %v1066
    %v1086 = vpack.c.b16 %v1069, %v1068
    %v1087 = vpack.c.b16 %v1071, %v1070
    %1104 = vmatpush.bf16.msra.mxu0 %v1079
    %1105 = vmatpush.bf16.msra.mxu0 %v1078
    %1106 = vmatpush.bf16.msra.mxu0 %v1077
    %1107 = vmatpush.bf16.msra.mxu0 %v1076
    %1108 = vmatpush.bf16.msra.mxu0 %v1075
    %1109 = vmatpush.bf16.msra.mxu0 %v1074
    %1110 = vmatpush.bf16.msra.mxu0 %v1073
    %1111 = vmatpush.bf16.msra.mxu0 %v1072
    %1112 = vmatmul.f32.gmra.mxu0 %v970
    %v1113 = vpop.f32.mrf.mxu0
    %v1114 = vadd.f32 %v1006, %v1113
    %1115 = vdwg.mxu0
    %1116 = vmatpush.bf16.msra.mxu0 %v1087
    %1117 = vmatpush.bf16.msra.mxu0 %v1086
    %1118 = vmatpush.bf16.msra.mxu0 %v1085
    %1119 = vmatpush.bf16.msra.mxu0 %v1084
    %1120 = vmatpush.bf16.msra.mxu0 %v1083
    %1121 = vmatpush.bf16.msra.mxu0 %v1082
    %1122 = vmatpush.bf16.msra.mxu0 %v1081
    %1123 = vmatpush.bf16.msra.mxu0 %v1080
    %1124 = vmatmul.f32.gmra.mxu0 %v971
    %v1125 = vpop.f32.mrf.mxu0
    %v1126 = vadd.f32 %v1114, %v1125
    %1127 = vdwg.mxu0
    %v1128 = vmax.f32 %v1126, 0.0
    %v1129 = vld [vmem:[#allocation7] sm:$0xf]
    %v1130 = vld [vmem:[#allocation7 + $0x4] sm:$0xf]
    %v1131 = vld [vmem:[#allocation7 + $0x8] sm:$0xf]
    %v1132 = vld [vmem:[#allocation7 + $0xc] sm:$0xf]
    %v1133 = vld [vmem:[#allocation7 + $0x10] sm:$0xf]
    %v1134 = vld [vmem:[#allocation7 + $0x14] sm:$0xf]
    %v1135 = vld [vmem:[#allocation7 + $0x18] sm:$0xf]
    %v1136 = vld [vmem:[#allocation7 + $0x1c] sm:$0xf]
    %v1137 = vld [vmem:[#allocation7 + $0x20] sm:$0xf]
    %v1138 = vld [vmem:[#allocation7 + $0x24] sm:$0xf]
    %v1139 = vld [vmem:[#allocation7 + $0x28] sm:$0xf]
    %v1140 = vld [vmem:[#allocation7 + $0x2c] sm:$0xf]
    %v1141 = vld [vmem:[#allocation7 + $0x30] sm:$0xf]
    %v1142 = vld [vmem:[#allocation7 + $0x34] sm:$0xf]
    %v1143 = vld [vmem:[#allocation7 + $0x38] sm:$0xf]
    %v1144 = vld [vmem:[#allocation7 + $0x3c] sm:$0xf]
    %v1145 = vld [vmem:[%s9] sm:$0x1]
    %v1147 = vperm.slane %v1145, 0
    %v1165 = vunpack.c.l.b16 %v1129
    %v1166 = vunpack.c.l.b16 %v1130
    %v1167 = vunpack.c.l.b16 %v1131
    %v1168 = vunpack.c.l.b16 %v1132
    %v1169 = vunpack.c.l.b16 %v1133
    %v1170 = vunpack.c.l.b16 %v1134
    %v1171 = vunpack.c.l.b16 %v1135
    %v1172 = vunpack.c.l.b16 %v1136
    %v1173 = vunpack.c.l.b16 %v1137
    %v1174 = vunpack.c.l.b16 %v1138
    %v1175 = vunpack.c.l.b16 %v1139
    %v1176 = vunpack.c.l.b16 %v1140
    %v1177 = vunpack.c.l.b16 %v1141
    %v1178 = vunpack.c.l.b16 %v1142
    %v1179 = vunpack.c.l.b16 %v1143
    %v1180 = vunpack.c.l.b16 %v1144
    %v1181 = vpack.c.b16 %v1166, %v1165
    %v1182 = vpack.c.b16 %v1168, %v1167
    %v1183 = vpack.c.b16 %v1170, %v1169
    %v1184 = vpack.c.b16 %v1172, %v1171
    %v1185 = vpack.c.b16 %v1174, %v1173
    %v1186 = vpack.c.b16 %v1176, %v1175
    %v1187 = vpack.c.b16 %v1178, %v1177
    %v1188 = vpack.c.b16 %v1180, %v1179
    %1197 = vmatpush.bf16.msra.mxu0 %v1188
    %1198 = vmatpush.bf16.msra.mxu0 %v1187
    %1199 = vmatpush.bf16.msra.mxu0 %v1186
    %1200 = vmatpush.bf16.msra.mxu0 %v1185
    %1201 = vmatpush.bf16.msra.mxu0 %v1184
    %1202 = vmatpush.bf16.msra.mxu0 %v1183
    %1203 = vmatpush.bf16.msra.mxu0 %v1182
    %1204 = vmatpush.bf16.msra.mxu0 %v1181
    %1205 = vmatmul.f32.gmra.mxu0 %v1128
    %v1206 = vpop.f32.mrf.mxu0
    %v1207 = vadd.f32 %v1147, %v1206
    %1208 = vdwg.mxu0
    %v1209 = vmax.f32 %v1207, 0.0
    %v1210 = vld [vmem:[#allocation9] sm:$0xff]
    %v1211 = vld [vmem:[#allocation9 + $0x8] sm:$0xff]
    %v1212 = vld [vmem:[#allocation9 + $0x10] sm:$0xff]
    %v1213 = vld [vmem:[#allocation9 + $0x18] sm:$0xff]
    %v1214 = vld [vmem:[#allocation9 + $0x20] sm:$0xff]
    %v1215 = vld [vmem:[#allocation9 + $0x28] sm:$0xff]
    %v1216 = vld [vmem:[#allocation9 + $0x30] sm:$0xff]
    %v1217 = vld [vmem:[#allocation9 + $0x38] sm:$0xff]
    %v1218 = vld [vmem:[#allocation9 + $0x40] sm:$0xff]
    %v1219 = vld [vmem:[#allocation9 + $0x48] sm:$0xff]
    %v1220 = vld [vmem:[#allocation9 + $0x50] sm:$0xff]
    %v1221 = vld [vmem:[#allocation9 + $0x58] sm:$0xff]
    %v1222 = vld [vmem:[#allocation9 + $0x60] sm:$0xff]
    %v1223 = vld [vmem:[#allocation9 + $0x68] sm:$0xff]
    %v1224 = vld [vmem:[#allocation9 + $0x70] sm:$0xff]
    %v1225 = vld [vmem:[#allocation9 + $0x78] sm:$0xff]
    %v1226 = vld [vmem:[#allocation9 + $0x80] sm:$0xff]
    %v1227 = vld [vmem:[#allocation9 + $0x88] sm:$0xff]
    %v1228 = vld [vmem:[#allocation9 + $0x90] sm:$0xff]
    %v1229 = vld [vmem:[#allocation9 + $0x98] sm:$0xff]
    %v1230 = vld [vmem:[#allocation9 + $0xa0] sm:$0xff]
    %v1231 = vld [vmem:[#allocation9 + $0xa8] sm:$0xff]
    %v1232 = vld [vmem:[#allocation9 + $0xb0] sm:$0xff]
    %v1233 = vld [vmem:[#allocation9 + $0xb8] sm:$0xff]
    %v1234 = vld [vmem:[#allocation9 + $0xc0] sm:$0xff]
    %v1235 = vld [vmem:[#allocation9 + $0xc8] sm:$0xff]
    %v1236 = vld [vmem:[#allocation9 + $0xd0] sm:$0xff]
    %v1237 = vld [vmem:[#allocation9 + $0xd8] sm:$0xff]
    %v1238 = vld [vmem:[#allocation9 + $0xe0] sm:$0xff]
    %v1239 = vld [vmem:[#allocation9 + $0xe8] sm:$0xff]
    %v1240 = vld [vmem:[#allocation9 + $0xf0] sm:$0xff]
    %v1241 = vld [vmem:[#allocation9 + $0xf8] sm:$0xff]
    %v1242 = vld [vmem:[%s11] sm:$0x3]
    %v1244 = vperm.slane %v1242, 0
    %v1245 = vperm.slane %v1242, 1
    %1248 = vmatpush.msra.mxu0 %v1240
    %1249 = vmatpush.msra.mxu0 %v1238
    %1250 = vmatpush.msra.mxu0 %v1236
    %1251 = vmatpush.msra.mxu0 %v1234
    %1252 = vmatpush.msra.mxu0 %v1232
    %1253 = vmatpush.msra.mxu0 %v1230
    %1254 = vmatpush.msra.mxu0 %v1228
    %1255 = vmatpush.msra.mxu0 %v1226
    %1256 = vmatpush.msra.mxu0 %v1224
    %1257 = vmatpush.msra.mxu0 %v1222
    %1258 = vmatpush.msra.mxu0 %v1220
    %1259 = vmatpush.msra.mxu0 %v1218
    %1260 = vmatpush.msra.mxu0 %v1216
    %1261 = vmatpush.msra.mxu0 %v1214
    %1262 = vmatpush.msra.mxu0 %v1212
    %1263 = vmatpush.msra.mxu0 %v1210
    %1264 = vmatmul.f32.gmra.mxu0 %v1209
    %v1265 = vpop.f32.mrf.mxu0
    %v1266 = vadd.f32 %v1244, %v1265
    %1267 = vdwg.mxu0
    %1268 = vmatpush.msra.mxu0 %v1241
    %1269 = vmatpush.msra.mxu0 %v1239
    %1270 = vmatpush.msra.mxu0 %v1237
    %1271 = vmatpush.msra.mxu0 %v1235
    %1272 = vmatpush.msra.mxu0 %v1233
    %1273 = vmatpush.msra.mxu0 %v1231
    %1274 = vmatpush.msra.mxu0 %v1229
    %1275 = vmatpush.msra.mxu0 %v1227
    %1276 = vmatpush.msra.mxu0 %v1225
    %1277 = vmatpush.msra.mxu0 %v1223
    %1278 = vmatpush.msra.mxu0 %v1221
    %1279 = vmatpush.msra.mxu0 %v1219
    %1280 = vmatpush.msra.mxu0 %v1217
    %1281 = vmatpush.msra.mxu0 %v1215
    %1282 = vmatpush.msra.mxu0 %v1213
    %1283 = vmatpush.msra.mxu0 %v1211
    %1284 = vmatmul.f32.gmra.mxu0 %v1209
    %v1285 = vpop.f32.mrf.mxu0
    %v1286 = vadd.f32 %v1245, %v1285
    %1287 = vdwg.mxu0
    %v1288 = vld [vmem:[%s1] sm:$0xff]
    %v1289 = vmul.f32 %v1286, 0.5
    %v1290 = vmul.f32 %v1289, 1.442695
    %v1291 = vpow.pop %v1290
    %v1292 = vmul.f32 %v1288, %v1291
    %v1293 = vadd.f32 %v1266, %v1292
    %v1294 = vld [vmem:[#allocation10] sm:$0xf]
    %v1295 = vld [vmem:[#allocation10 + $0x4] sm:$0xf]
    %v1296 = vld [vmem:[#allocation10 + $0x8] sm:$0xf]
    %v1297 = vld [vmem:[#allocation10 + $0xc] sm:$0xf]
    %v1298 = vld [vmem:[#allocation10 + $0x10] sm:$0xf]
    %v1299 = vld [vmem:[#allocation10 + $0x14] sm:$0xf]
    %v1300 = vld [vmem:[#allocation10 + $0x18] sm:$0xf]
    %v1301 = vld [vmem:[#allocation10 + $0x1c] sm:$0xf]
    %v1302 = vld [vmem:[#allocation10 + $0x20] sm:$0xf]
    %v1303 = vld [vmem:[#allocation10 + $0x24] sm:$0xf]
    %v1304 = vld [vmem:[#allocation10 + $0x28] sm:$0xf]
    %v1305 = vld [vmem:[#allocation10 + $0x2c] sm:$0xf]
    %v1306 = vld [vmem:[#allocation10 + $0x30] sm:$0xf]
    %v1307 = vld [vmem:[#allocation10 + $0x34] sm:$0xf]
    %v1308 = vld [vmem:[#allocation10 + $0x38] sm:$0xf]
    %v1309 = vld [vmem:[#allocation10 + $0x3c] sm:$0xf]
    %v1310 = vld [vmem:[%s13] sm:$0x1]
    %v1312 = vperm.slane %v1310, 0
    %v1330 = vunpack.c.l.b16 %v1294
    %v1331 = vunpack.c.l.b16 %v1295
    %v1332 = vunpack.c.l.b16 %v1296
    %v1333 = vunpack.c.l.b16 %v1297
    %v1334 = vunpack.c.l.b16 %v1298
    %v1335 = vunpack.c.l.b16 %v1299
    %v1336 = vunpack.c.l.b16 %v1300
    %v1337 = vunpack.c.l.b16 %v1301
    %v1338 = vunpack.c.l.b16 %v1302
    %v1339 = vunpack.c.l.b16 %v1303
    %v1340 = vunpack.c.l.b16 %v1304
    %v1341 = vunpack.c.l.b16 %v1305
    %v1342 = vunpack.c.l.b16 %v1306
    %v1343 = vunpack.c.l.b16 %v1307
    %v1344 = vunpack.c.l.b16 %v1308
    %v1345 = vunpack.c.l.b16 %v1309
    %v1346 = vpack.c.b16 %v1331, %v1330
    %v1347 = vpack.c.b16 %v1333, %v1332
    %v1348 = vpack.c.b16 %v1335, %v1334
    %v1349 = vpack.c.b16 %v1337, %v1336
    %v1350 = vpack.c.b16 %v1339, %v1338
    %v1351 = vpack.c.b16 %v1341, %v1340
    %v1352 = vpack.c.b16 %v1343, %v1342
    %v1353 = vpack.c.b16 %v1345, %v1344
    %1362 = vmatpush.bf16.msra.mxu0 %v1353
    %1363 = vmatpush.bf16.msra.mxu0 %v1352
    %1364 = vmatpush.bf16.msra.mxu0 %v1351
    %1365 = vmatpush.bf16.msra.mxu0 %v1350
    %1366 = vmatpush.bf16.msra.mxu0 %v1349
    %1367 = vmatpush.bf16.msra.mxu0 %v1348
    %1368 = vmatpush.bf16.msra.mxu0 %v1347
    %1369 = vmatpush.bf16.msra.mxu0 %v1346
    %1370 = vmatmul.f32.gmra.mxu0 %v1293
    %v1371 = vpop.f32.mrf.mxu0
    %v1372 = vadd.f32 %v1312, %v1371
    %1373 = vdwg.mxu0
    %v1374 = vmax.f32 %v1372, 0.0
    %v1375 = vld [vmem:[#allocation12] sm:$0xf]
    %v1376 = vld [vmem:[#allocation12 + $0x4] sm:$0xf]
    %v1377 = vld [vmem:[#allocation12 + $0x8] sm:$0xf]
    %v1378 = vld [vmem:[#allocation12 + $0xc] sm:$0xf]
    %v1379 = vld [vmem:[#allocation12 + $0x10] sm:$0xf]
    %v1380 = vld [vmem:[#allocation12 + $0x14] sm:$0xf]
    %v1381 = vld [vmem:[#allocation12 + $0x18] sm:$0xf]
    %v1382 = vld [vmem:[#allocation12 + $0x1c] sm:$0xf]
    %v1383 = vld [vmem:[#allocation12 + $0x20] sm:$0xf]
    %v1384 = vld [vmem:[#allocation12 + $0x24] sm:$0xf]
    %v1385 = vld [vmem:[#allocation12 + $0x28] sm:$0xf]
    %v1386 = vld [vmem:[#allocation12 + $0x2c] sm:$0xf]
    %v1387 = vld [vmem:[#allocation12 + $0x30] sm:$0xf]
    %v1388 = vld [vmem:[#allocation12 + $0x34] sm:$0xf]
    %v1389 = vld [vmem:[#allocation12 + $0x38] sm:$0xf]
    %v1390 = vld [vmem:[#allocation12 + $0x3c] sm:$0xf]
    %v1391 = vld [vmem:[%s15] sm:$0x1]
    %v1393 = vperm.slane %v1391, 0
    %v1411 = vunpack.c.l.b16 %v1375
    %v1412 = vunpack.c.l.b16 %v1376
    %v1413 = vunpack.c.l.b16 %v1377
    %v1414 = vunpack.c.l.b16 %v1378
    %v1415 = vunpack.c.l.b16 %v1379
    %v1416 = vunpack.c.l.b16 %v1380
    %v1417 = vunpack.c.l.b16 %v1381
    %v1418 = vunpack.c.l.b16 %v1382
    %v1419 = vunpack.c.l.b16 %v1383
    %v1420 = vunpack.c.l.b16 %v1384
    %v1421 = vunpack.c.l.b16 %v1385
    %v1422 = vunpack.c.l.b16 %v1386
    %v1423 = vunpack.c.l.b16 %v1387
    %v1424 = vunpack.c.l.b16 %v1388
    %v1425 = vunpack.c.l.b16 %v1389
    %v1426 = vunpack.c.l.b16 %v1390
    %v1427 = vpack.c.b16 %v1412, %v1411
    %v1428 = vpack.c.b16 %v1414, %v1413
    %v1429 = vpack.c.b16 %v1416, %v1415
    %v1430 = vpack.c.b16 %v1418, %v1417
    %v1431 = vpack.c.b16 %v1420, %v1419
    %v1432 = vpack.c.b16 %v1422, %v1421
    %v1433 = vpack.c.b16 %v1424, %v1423
    %v1434 = vpack.c.b16 %v1426, %v1425
    %1443 = vmatpush.bf16.msra.mxu0 %v1434
    %1444 = vmatpush.bf16.msra.mxu0 %v1433
    %1445 = vmatpush.bf16.msra.mxu0 %v1432
    %1446 = vmatpush.bf16.msra.mxu0 %v1431
    %1447 = vmatpush.bf16.msra.mxu0 %v1430
    %1448 = vmatpush.bf16.msra.mxu0 %v1429
    %1449 = vmatpush.bf16.msra.mxu0 %v1428
    %1450 = vmatpush.bf16.msra.mxu0 %v1427
    %1451 = vmatmul.f32.gmra.mxu0 %v1374
    %v1452 = vpop.f32.mrf.mxu0
    %v1453 = vadd.f32 %v1393, %v1452
    %1454 = vdwg.mxu0
    %v1455 = vmax.f32 %v1453, 0.0
    %v1456 = vld [vmem:[#allocation13] sm:$0xff]
    %v1457 = vld [vmem:[#allocation13 + $0x8] sm:$0xff]
    %v1458 = vld [vmem:[#allocation13 + $0x10] sm:$0xff]
    %v1459 = vld [vmem:[#allocation13 + $0x18] sm:$0xff]
    %v1460 = vld [vmem:[#allocation13 + $0x20] sm:$0xff]
    %v1461 = vld [vmem:[#allocation13 + $0x28] sm:$0xff]
    %v1462 = vld [vmem:[#allocation13 + $0x30] sm:$0xff]
    %v1463 = vld [vmem:[#allocation13 + $0x38] sm:$0xff]
    %v1464 = vld [vmem:[#allocation13 + $0x40] sm:$0xff]
    %v1465 = vld [vmem:[#allocation13 + $0x48] sm:$0xff]
    %v1466 = vld [vmem:[#allocation13 + $0x50] sm:$0xff]
    %v1467 = vld [vmem:[#allocation13 + $0x58] sm:$0xff]
    %v1468 = vld [vmem:[#allocation13 + $0x60] sm:$0xff]
    %v1469 = vld [vmem:[#allocation13 + $0x68] sm:$0xff]
    %v1470 = vld [vmem:[#allocation13 + $0x70] sm:$0xff]
    %v1471 = vld [vmem:[#allocation13 + $0x78] sm:$0xff]
    %v1472 = vld [vmem:[%s17] sm:$0x3]
    %v1474 = vperm.slane %v1472, 0
    %v1475 = vperm.slane %v1472, 1
    %v1494 = vunpack.c.l.b16 %v1456
    %v1495 = vunpack.c.h.b16 %v1456
    %v1496 = vunpack.c.l.b16 %v1457
    %v1497 = vunpack.c.h.b16 %v1457
    %v1498 = vunpack.c.l.b16 %v1458
    %v1499 = vunpack.c.h.b16 %v1458
    %v1500 = vunpack.c.l.b16 %v1459
    %v1501 = vunpack.c.h.b16 %v1459
    %v1502 = vunpack.c.l.b16 %v1460
    %v1503 = vunpack.c.h.b16 %v1460
    %v1504 = vunpack.c.l.b16 %v1461
    %v1505 = vunpack.c.h.b16 %v1461
    %v1506 = vunpack.c.l.b16 %v1462
    %v1507 = vunpack.c.h.b16 %v1462
    %v1508 = vunpack.c.l.b16 %v1463
    %v1509 = vunpack.c.h.b16 %v1463
    %v1510 = vunpack.c.l.b16 %v1464
    %v1511 = vunpack.c.h.b16 %v1464
    %v1512 = vunpack.c.l.b16 %v1465
    %v1513 = vunpack.c.h.b16 %v1465
    %v1514 = vunpack.c.l.b16 %v1466
    %v1515 = vunpack.c.h.b16 %v1466
    %v1516 = vunpack.c.l.b16 %v1467
    %v1517 = vunpack.c.h.b16 %v1467
    %v1518 = vunpack.c.l.b16 %v1468
    %v1519 = vunpack.c.h.b16 %v1468
    %v1520 = vunpack.c.l.b16 %v1469
    %v1521 = vunpack.c.h.b16 %v1469
    %v1522 = vunpack.c.l.b16 %v1470
    %v1523 = vunpack.c.h.b16 %v1470
    %v1524 = vunpack.c.l.b16 %v1471
    %v1525 = vunpack.c.h.b16 %v1471
    %v1526 = vpack.c.b16 %v1496, %v1494
    %v1527 = vpack.c.b16 %v1497, %v1495
    %v1528 = vpack.c.b16 %v1500, %v1498
    %v1529 = vpack.c.b16 %v1501, %v1499
    %v1530 = vpack.c.b16 %v1504, %v1502
    %v1531 = vpack.c.b16 %v1505, %v1503
    %v1532 = vpack.c.b16 %v1508, %v1506
    %v1533 = vpack.c.b16 %v1509, %v1507
    %v1534 = vpack.c.b16 %v1512, %v1510
    %v1535 = vpack.c.b16 %v1513, %v1511
    %v1536 = vpack.c.b16 %v1516, %v1514
    %v1537 = vpack.c.b16 %v1517, %v1515
    %v1538 = vpack.c.b16 %v1520, %v1518
    %v1539 = vpack.c.b16 %v1521, %v1519
    %v1540 = vpack.c.b16 %v1524, %v1522
    %v1541 = vpack.c.b16 %v1525, %v1523
    %1558 = vmatpush.bf16.msra.mxu0 %v1540
    %1559 = vmatpush.bf16.msra.mxu0 %v1538
    %1560 = vmatpush.bf16.msra.mxu0 %v1536
    %1561 = vmatpush.bf16.msra.mxu0 %v1534
    %1562 = vmatpush.bf16.msra.mxu0 %v1532
    %1563 = vmatpush.bf16.msra.mxu0 %v1530
    %1564 = vmatpush.bf16.msra.mxu0 %v1528
    %1565 = vmatpush.bf16.msra.mxu0 %v1526
    %1566 = vmatmul.f32.gmra.mxu0 %v1455
    %v1567 = vpop.f32.mrf.mxu0
    %v1568 = vadd.f32 %v1474, %v1567
    %1569 = vdwg.mxu0
    %1570 = vmatpush.bf16.msra.mxu0 %v1541
    %1571 = vmatpush.bf16.msra.mxu0 %v1539
    %1572 = vmatpush.bf16.msra.mxu0 %v1537
    %1573 = vmatpush.bf16.msra.mxu0 %v1535
    %1574 = vmatpush.bf16.msra.mxu0 %v1533
    %1575 = vmatpush.bf16.msra.mxu0 %v1531
    %1576 = vmatpush.bf16.msra.mxu0 %v1529
    %1577 = vmatpush.bf16.msra.mxu0 %v1527
    %1578 = vmatmul.f32.gmra.mxu0 %v1455
    %v1579 = vpop.f32.mrf.mxu0
    %v1580 = vadd.f32 %v1475, %v1579
    %1581 = vdwg.mxu0
    %v1582 = vmax.f32 %v1568, 0.0
    %v1583 = vmax.f32 %v1580, 0.0
    %v1584 = vld [vmem:[#allocation15] sm:$0xff]
    %v1585 = vld [vmem:[#allocation15 + $0x8] sm:$0xff]
    %v1586 = vld [vmem:[#allocation15 + $0x10] sm:$0xff]
    %v1587 = vld [vmem:[#allocation15 + $0x18] sm:$0xff]
    %v1588 = vld [vmem:[#allocation15 + $0x20] sm:$0xff]
    %v1589 = vld [vmem:[#allocation15 + $0x28] sm:$0xff]
    %v1590 = vld [vmem:[#allocation15 + $0x30] sm:$0xff]
    %v1591 = vld [vmem:[#allocation15 + $0x38] sm:$0xff]
    %v1592 = vld [vmem:[#allocation15 + $0x40] sm:$0xff]
    %v1593 = vld [vmem:[#allocation15 + $0x48] sm:$0xff]
    %v1594 = vld [vmem:[#allocation15 + $0x50] sm:$0xff]
    %v1595 = vld [vmem:[#allocation15 + $0x58] sm:$0xff]
    %v1596 = vld [vmem:[#allocation15 + $0x60] sm:$0xff]
    %v1597 = vld [vmem:[#allocation15 + $0x68] sm:$0xff]
    %v1598 = vld [vmem:[#allocation15 + $0x70] sm:$0xff]
    %v1599 = vld [vmem:[#allocation15 + $0x78] sm:$0xff]
    %v1600 = vld [vmem:[#allocation15 + $0x80] sm:$0xff]
    %v1601 = vld [vmem:[#allocation15 + $0x88] sm:$0xff]
    %v1602 = vld [vmem:[#allocation15 + $0x90] sm:$0xff]
    %v1603 = vld [vmem:[#allocation15 + $0x98] sm:$0xff]
    %v1604 = vld [vmem:[#allocation15 + $0xa0] sm:$0xff]
    %v1605 = vld [vmem:[#allocation15 + $0xa8] sm:$0xff]
    %v1606 = vld [vmem:[#allocation15 + $0xb0] sm:$0xff]
    %v1607 = vld [vmem:[#allocation15 + $0xb8] sm:$0xff]
    %v1608 = vld [vmem:[#allocation15 + $0xc0] sm:$0xff]
    %v1609 = vld [vmem:[#allocation15 + $0xc8] sm:$0xff]
    %v1610 = vld [vmem:[#allocation15 + $0xd0] sm:$0xff]
    %v1611 = vld [vmem:[#allocation15 + $0xd8] sm:$0xff]
    %v1612 = vld [vmem:[#allocation15 + $0xe0] sm:$0xff]
    %v1613 = vld [vmem:[#allocation15 + $0xe8] sm:$0xff]
    %v1614 = vld [vmem:[#allocation15 + $0xf0] sm:$0xff]
    %v1615 = vld [vmem:[#allocation15 + $0xf8] sm:$0xff]
    %v1616 = vld [vmem:[#allocation15 + $0x100] sm:$0xff]
    %v1617 = vld [vmem:[#allocation15 + $0x108] sm:$0xff]
    %v1618 = vld [vmem:[#allocation15 + $0x110] sm:$0xff]
    %v1619 = vld [vmem:[#allocation15 + $0x118] sm:$0xff]
    %v1620 = vld [vmem:[#allocation15 + $0x120] sm:$0xff]
    %v1621 = vld [vmem:[#allocation15 + $0x128] sm:$0xff]
    %v1622 = vld [vmem:[#allocation15 + $0x130] sm:$0xff]
    %v1623 = vld [vmem:[#allocation15 + $0x138] sm:$0xff]
    %v1624 = vld [vmem:[#allocation15 + $0x140] sm:$0xff]
    %v1625 = vld [vmem:[#allocation15 + $0x148] sm:$0xff]
    %v1626 = vld [vmem:[#allocation15 + $0x150] sm:$0xff]
    %v1627 = vld [vmem:[#allocation15 + $0x158] sm:$0xff]
    %v1628 = vld [vmem:[#allocation15 + $0x160] sm:$0xff]
    %v1629 = vld [vmem:[#allocation15 + $0x168] sm:$0xff]
    %v1630 = vld [vmem:[#allocation15 + $0x170] sm:$0xff]
    %v1631 = vld [vmem:[#allocation15 + $0x178] sm:$0xff]
    %v1632 = vld [vmem:[#allocation15 + $0x180] sm:$0xff]
    %v1633 = vld [vmem:[#allocation15 + $0x188] sm:$0xff]
    %v1634 = vld [vmem:[#allocation15 + $0x190] sm:$0xff]
    %v1635 = vld [vmem:[#allocation15 + $0x198] sm:$0xff]
    %v1636 = vld [vmem:[#allocation15 + $0x1a0] sm:$0xff]
    %v1637 = vld [vmem:[#allocation15 + $0x1a8] sm:$0xff]
    %v1638 = vld [vmem:[#allocation15 + $0x1b0] sm:$0xff]
    %v1639 = vld [vmem:[#allocation15 + $0x1b8] sm:$0xff]
    %v1640 = vld [vmem:[#allocation15 + $0x1c0] sm:$0xff]
    %v1641 = vld [vmem:[#allocation15 + $0x1c8] sm:$0xff]
    %v1642 = vld [vmem:[#allocation15 + $0x1d0] sm:$0xff]
    %v1643 = vld [vmem:[#allocation15 + $0x1d8] sm:$0xff]
    %v1644 = vld [vmem:[#allocation15 + $0x1e0] sm:$0xff]
    %v1645 = vld [vmem:[#allocation15 + $0x1e8] sm:$0xff]
    %v1646 = vld [vmem:[#allocation15 + $0x1f0] sm:$0xff]
    %v1647 = vld [vmem:[#allocation15 + $0x1f8] sm:$0xff]
    %v1648 = vld [vmem:[%s19] sm:$0xf]
    %v1650 = vperm.slane %v1648, 0
    %v1651 = vperm.slane %v1648, 1
    %v1652 = vperm.slane %v1648, 2
    %v1653 = vperm.slane %v1648, 3
    %v1722 = vunpack.c.l.b16 %v1584
    %v1723 = vunpack.c.h.b16 %v1584
    %v1724 = vunpack.c.l.b16 %v1585
    %v1725 = vunpack.c.h.b16 %v1585
    %v1726 = vunpack.c.l.b16 %v1586
    %v1727 = vunpack.c.h.b16 %v1586
    %v1728 = vunpack.c.l.b16 %v1587
    %v1729 = vunpack.c.h.b16 %v1587
    %v1730 = vunpack.c.l.b16 %v1588
    %v1731 = vunpack.c.h.b16 %v1588
    %v1732 = vunpack.c.l.b16 %v1589
    %v1733 = vunpack.c.h.b16 %v1589
    %v1734 = vunpack.c.l.b16 %v1590
    %v1735 = vunpack.c.h.b16 %v1590
    %v1736 = vunpack.c.l.b16 %v1591
    %v1737 = vunpack.c.h.b16 %v1591
    %v1738 = vunpack.c.l.b16 %v1592
    %v1739 = vunpack.c.h.b16 %v1592
    %v1740 = vunpack.c.l.b16 %v1593
    %v1741 = vunpack.c.h.b16 %v1593
    %v1742 = vunpack.c.l.b16 %v1594
    %v1743 = vunpack.c.h.b16 %v1594
    %v1744 = vunpack.c.l.b16 %v1595
    %v1745 = vunpack.c.h.b16 %v1595
    %v1746 = vunpack.c.l.b16 %v1596
    %v1747 = vunpack.c.h.b16 %v1596
    %v1748 = vunpack.c.l.b16 %v1597
    %v1749 = vunpack.c.h.b16 %v1597
    %v1750 = vunpack.c.l.b16 %v1598
    %v1751 = vunpack.c.h.b16 %v1598
    %v1752 = vunpack.c.l.b16 %v1599
    %v1753 = vunpack.c.h.b16 %v1599
    %v1754 = vunpack.c.l.b16 %v1600
    %v1755 = vunpack.c.h.b16 %v1600
    %v1756 = vunpack.c.l.b16 %v1601
    %v1757 = vunpack.c.h.b16 %v1601
    %v1758 = vunpack.c.l.b16 %v1602
    %v1759 = vunpack.c.h.b16 %v1602
    %v1760 = vunpack.c.l.b16 %v1603
    %v1761 = vunpack.c.h.b16 %v1603
    %v1762 = vunpack.c.l.b16 %v1604
    %v1763 = vunpack.c.h.b16 %v1604
    %v1764 = vunpack.c.l.b16 %v1605
    %v1765 = vunpack.c.h.b16 %v1605
    %v1766 = vunpack.c.l.b16 %v1606
    %v1767 = vunpack.c.h.b16 %v1606
    %v1768 = vunpack.c.l.b16 %v1607
    %v1769 = vunpack.c.h.b16 %v1607
    %v1770 = vunpack.c.l.b16 %v1608
    %v1771 = vunpack.c.h.b16 %v1608
    %v1772 = vunpack.c.l.b16 %v1609
    %v1773 = vunpack.c.h.b16 %v1609
    %v1774 = vunpack.c.l.b16 %v1610
    %v1775 = vunpack.c.h.b16 %v1610
    %v1776 = vunpack.c.l.b16 %v1611
    %v1777 = vunpack.c.h.b16 %v1611
    %v1778 = vunpack.c.l.b16 %v1612
    %v1779 = vunpack.c.h.b16 %v1612
    %v1780 = vunpack.c.l.b16 %v1613
    %v1781 = vunpack.c.h.b16 %v1613
    %v1782 = vunpack.c.l.b16 %v1614
    %v1783 = vunpack.c.h.b16 %v1614
    %v1784 = vunpack.c.l.b16 %v1615
    %v1785 = vunpack.c.h.b16 %v1615
    %v1786 = vunpack.c.l.b16 %v1616
    %v1787 = vunpack.c.h.b16 %v1616
    %v1788 = vunpack.c.l.b16 %v1617
    %v1789 = vunpack.c.h.b16 %v1617
    %v1790 = vunpack.c.l.b16 %v1618
    %v1791 = vunpack.c.h.b16 %v1618
    %v1792 = vunpack.c.l.b16 %v1619
    %v1793 = vunpack.c.h.b16 %v1619
    %v1794 = vunpack.c.l.b16 %v1620
    %v1795 = vunpack.c.h.b16 %v1620
    %v1796 = vunpack.c.l.b16 %v1621
    %v1797 = vunpack.c.h.b16 %v1621
    %v1798 = vunpack.c.l.b16 %v1622
    %v1799 = vunpack.c.h.b16 %v1622
    %v1800 = vunpack.c.l.b16 %v1623
    %v1801 = vunpack.c.h.b16 %v1623
    %v1802 = vunpack.c.l.b16 %v1624
    %v1803 = vunpack.c.h.b16 %v1624
    %v1804 = vunpack.c.l.b16 %v1625
    %v1805 = vunpack.c.h.b16 %v1625
    %v1806 = vunpack.c.l.b16 %v1626
    %v1807 = vunpack.c.h.b16 %v1626
    %v1808 = vunpack.c.l.b16 %v1627
    %v1809 = vunpack.c.h.b16 %v1627
    %v1810 = vunpack.c.l.b16 %v1628
    %v1811 = vunpack.c.h.b16 %v1628
    %v1812 = vunpack.c.l.b16 %v1629
    %v1813 = vunpack.c.h.b16 %v1629
    %v1814 = vunpack.c.l.b16 %v1630
    %v1815 = vunpack.c.h.b16 %v1630
    %v1816 = vunpack.c.l.b16 %v1631
    %v1817 = vunpack.c.h.b16 %v1631
    %v1818 = vunpack.c.l.b16 %v1632
    %v1819 = vunpack.c.h.b16 %v1632
    %v1820 = vunpack.c.l.b16 %v1633
    %v1821 = vunpack.c.h.b16 %v1633
    %v1822 = vunpack.c.l.b16 %v1634
    %v1823 = vunpack.c.h.b16 %v1634
    %v1824 = vunpack.c.l.b16 %v1635
    %v1825 = vunpack.c.h.b16 %v1635
    %v1826 = vunpack.c.l.b16 %v1636
    %v1827 = vunpack.c.h.b16 %v1636
    %v1828 = vunpack.c.l.b16 %v1637
    %v1829 = vunpack.c.h.b16 %v1637
    %v1830 = vunpack.c.l.b16 %v1638
    %v1831 = vunpack.c.h.b16 %v1638
    %v1832 = vunpack.c.l.b16 %v1639
    %v1833 = vunpack.c.h.b16 %v1639
    %v1834 = vunpack.c.l.b16 %v1640
    %v1835 = vunpack.c.h.b16 %v1640
    %v1836 = vunpack.c.l.b16 %v1641
    %v1837 = vunpack.c.h.b16 %v1641
    %v1838 = vunpack.c.l.b16 %v1642
    %v1839 = vunpack.c.h.b16 %v1642
    %v1840 = vunpack.c.l.b16 %v1643
    %v1841 = vunpack.c.h.b16 %v1643
    %v1842 = vunpack.c.l.b16 %v1644
    %v1843 = vunpack.c.h.b16 %v1644
    %v1844 = vunpack.c.l.b16 %v1645
    %v1845 = vunpack.c.h.b16 %v1645
    %v1846 = vunpack.c.l.b16 %v1646
    %v1847 = vunpack.c.h.b16 %v1646
    %v1848 = vunpack.c.l.b16 %v1647
    %v1849 = vunpack.c.h.b16 %v1647
    %v1850 = vpack.c.b16 %v1726, %v1722
    %v1851 = vpack.c.b16 %v1727, %v1723
    %v1852 = vpack.c.b16 %v1728, %v1724
    %v1853 = vpack.c.b16 %v1729, %v1725
    %v1854 = vpack.c.b16 %v1734, %v1730
    %v1855 = vpack.c.b16 %v1735, %v1731
    %v1856 = vpack.c.b16 %v1736, %v1732
    %v1857 = vpack.c.b16 %v1737, %v1733
    %v1858 = vpack.c.b16 %v1742, %v1738
    %v1859 = vpack.c.b16 %v1743, %v1739
    %v1860 = vpack.c.b16 %v1744, %v1740
    %v1861 = vpack.c.b16 %v1745, %v1741
    %v1862 = vpack.c.b16 %v1750, %v1746
    %v1863 = vpack.c.b16 %v1751, %v1747
    %v1864 = vpack.c.b16 %v1752, %v1748
    %v1865 = vpack.c.b16 %v1753, %v1749
    %v1866 = vpack.c.b16 %v1758, %v1754
    %v1867 = vpack.c.b16 %v1759, %v1755
    %v1868 = vpack.c.b16 %v1760, %v1756
    %v1869 = vpack.c.b16 %v1761, %v1757
    %v1870 = vpack.c.b16 %v1766, %v1762
    %v1871 = vpack.c.b16 %v1767, %v1763
    %v1872 = vpack.c.b16 %v1768, %v1764
    %v1873 = vpack.c.b16 %v1769, %v1765
    %v1874 = vpack.c.b16 %v1774, %v1770
    %v1875 = vpack.c.b16 %v1775, %v1771
    %v1876 = vpack.c.b16 %v1776, %v1772
    %v1877 = vpack.c.b16 %v1777, %v1773
    %v1878 = vpack.c.b16 %v1782, %v1778
    %v1879 = vpack.c.b16 %v1783, %v1779
    %v1880 = vpack.c.b16 %v1784, %v1780
    %v1881 = vpack.c.b16 %v1785, %v1781
    %v1882 = vpack.c.b16 %v1790, %v1786
    %v1883 = vpack.c.b16 %v1791, %v1787
    %v1884 = vpack.c.b16 %v1792, %v1788
    %v1885 = vpack.c.b16 %v1793, %v1789
    %v1886 = vpack.c.b16 %v1798, %v1794
    %v1887 = vpack.c.b16 %v1799, %v1795
    %v1888 = vpack.c.b16 %v1800, %v1796
    %v1889 = vpack.c.b16 %v1801, %v1797
    %v1890 = vpack.c.b16 %v1806, %v1802
    %v1891 = vpack.c.b16 %v1807, %v1803
    %v1892 = vpack.c.b16 %v1808, %v1804
    %v1893 = vpack.c.b16 %v1809, %v1805
    %v1894 = vpack.c.b16 %v1814, %v1810
    %v1895 = vpack.c.b16 %v1815, %v1811
    %v1896 = vpack.c.b16 %v1816, %v1812
    %v1897 = vpack.c.b16 %v1817, %v1813
    %v1898 = vpack.c.b16 %v1822, %v1818
    %v1899 = vpack.c.b16 %v1823, %v1819
    %v1900 = vpack.c.b16 %v1824, %v1820
    %v1901 = vpack.c.b16 %v1825, %v1821
    %v1902 = vpack.c.b16 %v1830, %v1826
    %v1903 = vpack.c.b16 %v1831, %v1827
    %v1904 = vpack.c.b16 %v1832, %v1828
    %v1905 = vpack.c.b16 %v1833, %v1829
    %v1906 = vpack.c.b16 %v1838, %v1834
    %v1907 = vpack.c.b16 %v1839, %v1835
    %v1908 = vpack.c.b16 %v1840, %v1836
    %v1909 = vpack.c.b16 %v1841, %v1837
    %v1910 = vpack.c.b16 %v1846, %v1842
    %v1911 = vpack.c.b16 %v1847, %v1843
    %v1912 = vpack.c.b16 %v1848, %v1844
    %v1913 = vpack.c.b16 %v1849, %v1845
    %1978 = vmatpush.bf16.msra.mxu0 %v1878
    %1979 = vmatpush.bf16.msra.mxu0 %v1874
    %1980 = vmatpush.bf16.msra.mxu0 %v1870
    %1981 = vmatpush.bf16.msra.mxu0 %v1866
    %1982 = vmatpush.bf16.msra.mxu0 %v1862
    %1983 = vmatpush.bf16.msra.mxu0 %v1858
    %1984 = vmatpush.bf16.msra.mxu0 %v1854
    %1985 = vmatpush.bf16.msra.mxu0 %v1850
    %1986 = vmatmul.f32.gmra.mxu0 %v1582
    %v1987 = vpop.f32.mrf.mxu0
    %v1988 = vadd.f32 %v1650, %v1987
    %1989 = vdwg.mxu0
    %1990 = vmatpush.bf16.msra.mxu0 %v1910
    %1991 = vmatpush.bf16.msra.mxu0 %v1906
    %1992 = vmatpush.bf16.msra.mxu0 %v1902
    %1993 = vmatpush.bf16.msra.mxu0 %v1898
    %1994 = vmatpush.bf16.msra.mxu0 %v1894
    %1995 = vmatpush.bf16.msra.mxu0 %v1890
    %1996 = vmatpush.bf16.msra.mxu0 %v1886
    %1997 = vmatpush.bf16.msra.mxu0 %v1882
    %1998 = vmatmul.f32.gmra.mxu0 %v1583
    %v1999 = vpop.f32.mrf.mxu0
    %v2000 = vadd.f32 %v1988, %v1999
    %2001 = vdwg.mxu0
    %2002 = vmatpush.bf16.msra.mxu0 %v1879
    %2003 = vmatpush.bf16.msra.mxu0 %v1875
    %2004 = vmatpush.bf16.msra.mxu0 %v1871
    %2005 = vmatpush.bf16.msra.mxu0 %v1867
    %2006 = vmatpush.bf16.msra.mxu0 %v1863
    %2007 = vmatpush.bf16.msra.mxu0 %v1859
    %2008 = vmatpush.bf16.msra.mxu0 %v1855
    %2009 = vmatpush.bf16.msra.mxu0 %v1851
    %2010 = vmatmul.f32.gmra.mxu0 %v1582
    %v2011 = vpop.f32.mrf.mxu0
    %v2012 = vadd.f32 %v1651, %v2011
    %2013 = vdwg.mxu0
    %2014 = vmatpush.bf16.msra.mxu0 %v1911
    %2015 = vmatpush.bf16.msra.mxu0 %v1907
    %2016 = vmatpush.bf16.msra.mxu0 %v1903
    %2017 = vmatpush.bf16.msra.mxu0 %v1899
    %2018 = vmatpush.bf16.msra.mxu0 %v1895
    %2019 = vmatpush.bf16.msra.mxu0 %v1891
    %2020 = vmatpush.bf16.msra.mxu0 %v1887
    %2021 = vmatpush.bf16.msra.mxu0 %v1883
    %2022 = vmatmul.f32.gmra.mxu0 %v1583
    %v2023 = vpop.f32.mrf.mxu0
    %v2024 = vadd.f32 %v2012, %v2023
    %2025 = vdwg.mxu0
    %2026 = vmatpush.bf16.msra.mxu0 %v1880
    %2027 = vmatpush.bf16.msra.mxu0 %v1876
    %2028 = vmatpush.bf16.msra.mxu0 %v1872
    %2029 = vmatpush.bf16.msra.mxu0 %v1868
    %2030 = vmatpush.bf16.msra.mxu0 %v1864
    %2031 = vmatpush.bf16.msra.mxu0 %v1860
    %2032 = vmatpush.bf16.msra.mxu0 %v1856
    %2033 = vmatpush.bf16.msra.mxu0 %v1852
    %2034 = vmatmul.f32.gmra.mxu0 %v1582
    %v2035 = vpop.f32.mrf.mxu0
    %v2036 = vadd.f32 %v1652, %v2035
    %2037 = vdwg.mxu0
    %2038 = vmatpush.bf16.msra.mxu0 %v1912
    %2039 = vmatpush.bf16.msra.mxu0 %v1908
    %2040 = vmatpush.bf16.msra.mxu0 %v1904
    %2041 = vmatpush.bf16.msra.mxu0 %v1900
    %2042 = vmatpush.bf16.msra.mxu0 %v1896
    %2043 = vmatpush.bf16.msra.mxu0 %v1892
    %2044 = vmatpush.bf16.msra.mxu0 %v1888
    %2045 = vmatpush.bf16.msra.mxu0 %v1884
    %2046 = vmatmul.f32.gmra.mxu0 %v1583
    %v2047 = vpop.f32.mrf.mxu0
    %v2048 = vadd.f32 %v2036, %v2047
    %2049 = vdwg.mxu0
    %2050 = vmatpush.bf16.msra.mxu0 %v1881
    %2051 = vmatpush.bf16.msra.mxu0 %v1877
    %2052 = vmatpush.bf16.msra.mxu0 %v1873
    %2053 = vmatpush.bf16.msra.mxu0 %v1869
    %2054 = vmatpush.bf16.msra.mxu0 %v1865
    %2055 = vmatpush.bf16.msra.mxu0 %v1861
    %2056 = vmatpush.bf16.msra.mxu0 %v1857
    %2057 = vmatpush.bf16.msra.mxu0 %v1853
    %2058 = vmatmul.f32.gmra.mxu0 %v1582
    %v2059 = vpop.f32.mrf.mxu0
    %v2060 = vadd.f32 %v1653, %v2059
    %2061 = vdwg.mxu0
    %2062 = vmatpush.bf16.msra.mxu0 %v1913
    %2063 = vmatpush.bf16.msra.mxu0 %v1909
    %2064 = vmatpush.bf16.msra.mxu0 %v1905
    %2065 = vmatpush.bf16.msra.mxu0 %v1901
    %2066 = vmatpush.bf16.msra.mxu0 %v1897
    %2067 = vmatpush.bf16.msra.mxu0 %v1893
    %2068 = vmatpush.bf16.msra.mxu0 %v1889
    %2069 = vmatpush.bf16.msra.mxu0 %v1885
    %2070 = vmatmul.f32.gmra.mxu0 %v1583
    %v2071 = vpop.f32.mrf.mxu0
    %v2072 = vadd.f32 %v2060, %v2071
    %2073 = vdwg.mxu0
    %v2074 = vmax.f32 %v2000, 0.0
    %v2075 = vmax.f32 %v2024, 0.0
    %v2076 = vmax.f32 %v2048, 0.0
    %v2077 = vmax.f32 %v2072, 0.0
    %v2078 = vld [vmem:[#allocation16] sm:$0xf]
    %v2079 = vld [vmem:[#allocation16 + $0x4] sm:$0xf]
    %v2080 = vld [vmem:[#allocation16 + $0x8] sm:$0xf]
    %v2081 = vld [vmem:[#allocation16 + $0xc] sm:$0xf]
    %v2082 = vld [vmem:[#allocation16 + $0x10] sm:$0xf]
    %v2083 = vld [vmem:[#allocation16 + $0x14] sm:$0xf]
    %v2084 = vld [vmem:[#allocation16 + $0x18] sm:$0xf]
    %v2085 = vld [vmem:[#allocation16 + $0x1c] sm:$0xf]
    %v2086 = vld [vmem:[#allocation16 + $0x20] sm:$0xf]
    %v2087 = vld [vmem:[#allocation16 + $0x24] sm:$0xf]
    %v2088 = vld [vmem:[#allocation16 + $0x28] sm:$0xf]
    %v2089 = vld [vmem:[#allocation16 + $0x2c] sm:$0xf]
    %v2090 = vld [vmem:[#allocation16 + $0x30] sm:$0xf]
    %v2091 = vld [vmem:[#allocation16 + $0x34] sm:$0xf]
    %v2092 = vld [vmem:[#allocation16 + $0x38] sm:$0xf]
    %v2093 = vld [vmem:[#allocation16 + $0x3c] sm:$0xf]
    %v2094 = vld [vmem:[#allocation16 + $0x40] sm:$0xf]
    %v2095 = vld [vmem:[#allocation16 + $0x44] sm:$0xf]
    %v2096 = vld [vmem:[#allocation16 + $0x48] sm:$0xf]
    %v2097 = vld [vmem:[#allocation16 + $0x4c] sm:$0xf]
    %v2098 = vld [vmem:[#allocation16 + $0x50] sm:$0xf]
    %v2099 = vld [vmem:[#allocation16 + $0x54] sm:$0xf]
    %v2100 = vld [vmem:[#allocation16 + $0x58] sm:$0xf]
    %v2101 = vld [vmem:[#allocation16 + $0x5c] sm:$0xf]
    %v2102 = vld [vmem:[#allocation16 + $0x60] sm:$0xf]
    %v2103 = vld [vmem:[#allocation16 + $0x64] sm:$0xf]
    %v2104 = vld [vmem:[#allocation16 + $0x68] sm:$0xf]
    %v2105 = vld [vmem:[#allocation16 + $0x6c] sm:$0xf]
    %v2106 = vld [vmem:[#allocation16 + $0x70] sm:$0xf]
    %v2107 = vld [vmem:[#allocation16 + $0x74] sm:$0xf]
    %v2108 = vld [vmem:[#allocation16 + $0x78] sm:$0xf]
    %v2109 = vld [vmem:[#allocation16 + $0x7c] sm:$0xf]
    %v2110 = vld [vmem:[#allocation16 + $0x80] sm:$0xf]
    %v2111 = vld [vmem:[#allocation16 + $0x84] sm:$0xf]
    %v2112 = vld [vmem:[#allocation16 + $0x88] sm:$0xf]
    %v2113 = vld [vmem:[#allocation16 + $0x8c] sm:$0xf]
    %v2114 = vld [vmem:[#allocation16 + $0x90] sm:$0xf]
    %v2115 = vld [vmem:[#allocation16 + $0x94] sm:$0xf]
    %v2116 = vld [vmem:[#allocation16 + $0x98] sm:$0xf]
    %v2117 = vld [vmem:[#allocation16 + $0x9c] sm:$0xf]
    %v2118 = vld [vmem:[#allocation16 + $0xa0] sm:$0xf]
    %v2119 = vld [vmem:[#allocation16 + $0xa4] sm:$0xf]
    %v2120 = vld [vmem:[#allocation16 + $0xa8] sm:$0xf]
    %v2121 = vld [vmem:[#allocation16 + $0xac] sm:$0xf]
    %v2122 = vld [vmem:[#allocation16 + $0xb0] sm:$0xf]
    %v2123 = vld [vmem:[#allocation16 + $0xb4] sm:$0xf]
    %v2124 = vld [vmem:[#allocation16 + $0xb8] sm:$0xf]
    %v2125 = vld [vmem:[#allocation16 + $0xbc] sm:$0xf]
    %v2126 = vld [vmem:[#allocation16 + $0xc0] sm:$0xf]
    %v2127 = vld [vmem:[#allocation16 + $0xc4] sm:$0xf]
    %v2128 = vld [vmem:[#allocation16 + $0xc8] sm:$0xf]
    %v2129 = vld [vmem:[#allocation16 + $0xcc] sm:$0xf]
    %v2130 = vld [vmem:[#allocation16 + $0xd0] sm:$0xf]
    %v2131 = vld [vmem:[#allocation16 + $0xd4] sm:$0xf]
    %v2132 = vld [vmem:[#allocation16 + $0xd8] sm:$0xf]
    %v2133 = vld [vmem:[#allocation16 + $0xdc] sm:$0xf]
    %v2134 = vld [vmem:[#allocation16 + $0xe0] sm:$0xf]
    %v2135 = vld [vmem:[#allocation16 + $0xe4] sm:$0xf]
    %v2136 = vld [vmem:[#allocation16 + $0xe8] sm:$0xf]
    %v2137 = vld [vmem:[#allocation16 + $0xec] sm:$0xf]
    %v2138 = vld [vmem:[#allocation16 + $0xf0] sm:$0xf]
    %v2139 = vld [vmem:[#allocation16 + $0xf4] sm:$0xf]
    %v2140 = vld [vmem:[#allocation16 + $0xf8] sm:$0xf]
    %v2141 = vld [vmem:[#allocation16 + $0xfc] sm:$0xf]
    %v2142 = vld [vmem:[%s21] sm:$0x1]
    %v2144 = vperm.slane %v2142, 0
    %v2210 = vunpack.c.l.b16 %v2078
    %v2211 = vunpack.c.l.b16 %v2079
    %v2212 = vunpack.c.l.b16 %v2080
    %v2213 = vunpack.c.l.b16 %v2081
    %v2214 = vunpack.c.l.b16 %v2082
    %v2215 = vunpack.c.l.b16 %v2083
    %v2216 = vunpack.c.l.b16 %v2084
    %v2217 = vunpack.c.l.b16 %v2085
    %v2218 = vunpack.c.l.b16 %v2086
    %v2219 = vunpack.c.l.b16 %v2087
    %v2220 = vunpack.c.l.b16 %v2088
    %v2221 = vunpack.c.l.b16 %v2089
    %v2222 = vunpack.c.l.b16 %v2090
    %v2223 = vunpack.c.l.b16 %v2091
    %v2224 = vunpack.c.l.b16 %v2092
    %v2225 = vunpack.c.l.b16 %v2093
    %v2226 = vunpack.c.l.b16 %v2094
    %v2227 = vunpack.c.l.b16 %v2095
    %v2228 = vunpack.c.l.b16 %v2096
    %v2229 = vunpack.c.l.b16 %v2097
    %v2230 = vunpack.c.l.b16 %v2098
    %v2231 = vunpack.c.l.b16 %v2099
    %v2232 = vunpack.c.l.b16 %v2100
    %v2233 = vunpack.c.l.b16 %v2101
    %v2234 = vunpack.c.l.b16 %v2102
    %v2235 = vunpack.c.l.b16 %v2103
    %v2236 = vunpack.c.l.b16 %v2104
    %v2237 = vunpack.c.l.b16 %v2105
    %v2238 = vunpack.c.l.b16 %v2106
    %v2239 = vunpack.c.l.b16 %v2107
    %v2240 = vunpack.c.l.b16 %v2108
    %v2241 = vunpack.c.l.b16 %v2109
    %v2242 = vunpack.c.l.b16 %v2110
    %v2243 = vunpack.c.l.b16 %v2111
    %v2244 = vunpack.c.l.b16 %v2112
    %v2245 = vunpack.c.l.b16 %v2113
    %v2246 = vunpack.c.l.b16 %v2114
    %v2247 = vunpack.c.l.b16 %v2115
    %v2248 = vunpack.c.l.b16 %v2116
    %v2249 = vunpack.c.l.b16 %v2117
    %v2250 = vunpack.c.l.b16 %v2118
    %v2251 = vunpack.c.l.b16 %v2119
    %v2252 = vunpack.c.l.b16 %v2120
    %v2253 = vunpack.c.l.b16 %v2121
    %v2254 = vunpack.c.l.b16 %v2122
    %v2255 = vunpack.c.l.b16 %v2123
    %v2256 = vunpack.c.l.b16 %v2124
    %v2257 = vunpack.c.l.b16 %v2125
    %v2258 = vunpack.c.l.b16 %v2126
    %v2259 = vunpack.c.l.b16 %v2127
    %v2260 = vunpack.c.l.b16 %v2128
    %v2261 = vunpack.c.l.b16 %v2129
    %v2262 = vunpack.c.l.b16 %v2130
    %v2263 = vunpack.c.l.b16 %v2131
    %v2264 = vunpack.c.l.b16 %v2132
    %v2265 = vunpack.c.l.b16 %v2133
    %v2266 = vunpack.c.l.b16 %v2134
    %v2267 = vunpack.c.l.b16 %v2135
    %v2268 = vunpack.c.l.b16 %v2136
    %v2269 = vunpack.c.l.b16 %v2137
    %v2270 = vunpack.c.l.b16 %v2138
    %v2271 = vunpack.c.l.b16 %v2139
    %v2272 = vunpack.c.l.b16 %v2140
    %v2273 = vunpack.c.l.b16 %v2141
    %v2274 = vpack.c.b16 %v2211, %v2210
    %v2275 = vpack.c.b16 %v2213, %v2212
    %v2276 = vpack.c.b16 %v2215, %v2214
    %v2277 = vpack.c.b16 %v2217, %v2216
    %v2278 = vpack.c.b16 %v2219, %v2218
    %v2279 = vpack.c.b16 %v2221, %v2220
    %v2280 = vpack.c.b16 %v2223, %v2222
    %v2281 = vpack.c.b16 %v2225, %v2224
    %v2282 = vpack.c.b16 %v2227, %v2226
    %v2283 = vpack.c.b16 %v2229, %v2228
    %v2284 = vpack.c.b16 %v2231, %v2230
    %v2285 = vpack.c.b16 %v2233, %v2232
    %v2286 = vpack.c.b16 %v2235, %v2234
    %v2287 = vpack.c.b16 %v2237, %v2236
    %v2288 = vpack.c.b16 %v2239, %v2238
    %v2289 = vpack.c.b16 %v2241, %v2240
    %v2290 = vpack.c.b16 %v2243, %v2242
    %v2291 = vpack.c.b16 %v2245, %v2244
    %v2292 = vpack.c.b16 %v2247, %v2246
    %v2293 = vpack.c.b16 %v2249, %v2248
    %v2294 = vpack.c.b16 %v2251, %v2250
    %v2295 = vpack.c.b16 %v2253, %v2252
    %v2296 = vpack.c.b16 %v2255, %v2254
    %v2297 = vpack.c.b16 %v2257, %v2256
    %v2298 = vpack.c.b16 %v2259, %v2258
    %v2299 = vpack.c.b16 %v2261, %v2260
    %v2300 = vpack.c.b16 %v2263, %v2262
    %v2301 = vpack.c.b16 %v2265, %v2264
    %v2302 = vpack.c.b16 %v2267, %v2266
    %v2303 = vpack.c.b16 %v2269, %v2268
    %v2304 = vpack.c.b16 %v2271, %v2270
    %v2305 = vpack.c.b16 %v2273, %v2272
    %2338 = vmatpush.bf16.msra.mxu0 %v2281
    %2339 = vmatpush.bf16.msra.mxu0 %v2280
    %2340 = vmatpush.bf16.msra.mxu0 %v2279
    %2341 = vmatpush.bf16.msra.mxu0 %v2278
    %2342 = vmatpush.bf16.msra.mxu0 %v2277
    %2343 = vmatpush.bf16.msra.mxu0 %v2276
    %2344 = vmatpush.bf16.msra.mxu0 %v2275
    %2345 = vmatpush.bf16.msra.mxu0 %v2274
    %2346 = vmatmul.f32.gmra.mxu0 %v2074
    %v2347 = vpop.f32.mrf.mxu0
    %v2348 = vadd.f32 %v2144, %v2347
    %2349 = vdwg.mxu0
    %2350 = vmatpush.bf16.msra.mxu0 %v2289
    %2351 = vmatpush.bf16.msra.mxu0 %v2288
    %2352 = vmatpush.bf16.msra.mxu0 %v2287
    %2353 = vmatpush.bf16.msra.mxu0 %v2286
    %2354 = vmatpush.bf16.msra.mxu0 %v2285
    %2355 = vmatpush.bf16.msra.mxu0 %v2284
    %2356 = vmatpush.bf16.msra.mxu0 %v2283
    %2357 = vmatpush.bf16.msra.mxu0 %v2282
    %2358 = vmatmul.f32.gmra.mxu0 %v2075
    %v2359 = vpop.f32.mrf.mxu0
    %v2360 = vadd.f32 %v2348, %v2359
    %2361 = vdwg.mxu0
    %2362 = vmatpush.bf16.msra.mxu0 %v2297
    %2363 = vmatpush.bf16.msra.mxu0 %v2296
    %2364 = vmatpush.bf16.msra.mxu0 %v2295
    %2365 = vmatpush.bf16.msra.mxu0 %v2294
    %2366 = vmatpush.bf16.msra.mxu0 %v2293
    %2367 = vmatpush.bf16.msra.mxu0 %v2292
    %2368 = vmatpush.bf16.msra.mxu0 %v2291
    %2369 = vmatpush.bf16.msra.mxu0 %v2290
    %2370 = vmatmul.f32.gmra.mxu0 %v2076
    %v2371 = vpop.f32.mrf.mxu0
    %v2372 = vadd.f32 %v2360, %v2371
    %2373 = vdwg.mxu0
    %2374 = vmatpush.bf16.msra.mxu0 %v2305
    %2375 = vmatpush.bf16.msra.mxu0 %v2304
    %2376 = vmatpush.bf16.msra.mxu0 %v2303
    %2377 = vmatpush.bf16.msra.mxu0 %v2302
    %2378 = vmatpush.bf16.msra.mxu0 %v2301
    %2379 = vmatpush.bf16.msra.mxu0 %v2300
    %2380 = vmatpush.bf16.msra.mxu0 %v2299
    %2381 = vmatpush.bf16.msra.mxu0 %v2298
    %2382 = vmatmul.f32.gmra.mxu0 %v2077
    %v2383 = vpop.f32.mrf.mxu0
    %v2384 = vadd.f32 %v2372, %v2383
    %2385 = vdwg.mxu0
    %v2386 = vxor.u32 %v2384, 2147483648
    %v2387 = vmul.f32 %v2386, 1.442695
    %v2388 = vpow.pop %v2387
    %v2389 = vadd.f32 %v2388, 1.0
    %v2390 = vrcp.pop %v2389
    %v2391 = vmul.f32 %v2389, %v2390
    %v2392 = vsub.f32 1.0, %v2391
    %v2393 = vmul.f32 %v2390, %v2392
    %v2394 = vadd.f32 %v2390, %v2393
    %vm2395 = vweird.f32 %v2389
    %vm2396 = vweird.f32 %v2390
    %vm2397 = vmor %vm2395, %vm2396
    %v2398 = vsel %vm2397, %v2390, %v2394
    %v2399 = vand.u32 2147483647, %v2389
    %vm2400 = vcmp.eq.f32.partialorder %v2399, 8.507059e+37
    %v2401 = vand.u32 %v2389, 2147483648
    %v2402 = vor.u32 1.1754944e-38, %v2401
    %v2403 = vsel %vm2400, %v2402, %v2398
    %v2404 = vmul.f32 1.0, %v2403
    %2405 = vst [vmem:[%s22] sm:$0xff] %v2404
    %2406 = vst [vmem:[%s23] sm:$0xff] %v1266
    %2407 = vst [vmem:[%s23 + $0x8] sm:$0xff] %v1286
    %2408 = vst [vmem:[%s23 + $0x10] sm:$0xff] %v1293
    // Predicated region
    $region130: #{mlpvae_forward.1} parent=1 // pred_check
      _
    $region131: #{mlpvae_forward.1} parent=1 // pred_check_branch
      %2410 = sbr.rel (0) target = $region133
    $region132: #{mlpvae_forward.1} parent=1 // pred_region
      _
    $region133: #{mlpvae_forward.1} parent=1 // pred_fallthru
      _
    // Predicated region
    $region134: #{mlpvae_forward.1} parent=1 // pred_check
      _
    $region135: #{mlpvae_forward.1} parent=1 // pred_check_branch
      %2412 = sbr.rel (0) target = $region137
    $region136: #{mlpvae_forward.1} parent=1 // pred_region
      _
    $region137: #{mlpvae_forward.1} parent=1 // pred_fallthru
      _
    // Predicated region
    $region138: #{mlpvae_forward.1} parent=1 // pred_check
      _
    $region139: #{mlpvae_forward.1} parent=1 // pred_check_branch
      %2414 = sbr.rel (0) target = $region141
    $region140: #{mlpvae_forward.1} parent=1 // pred_region
      _
    $region141: #{mlpvae_forward.1} parent=1 // pred_fallthru
      _
    // Predicated region
    $region142: #{mlpvae_forward.1} parent=1 // pred_check
      _
    $region143: #{mlpvae_forward.1} parent=1 // pred_check_branch
      %2416 = sbr.rel (0) target = $region145
    $region144: #{mlpvae_forward.1} parent=1 // pred_region
      _
    $region145: #{mlpvae_forward.1} parent=1 // pred_fallthru
      _
    %2417 = vsyncpa [#allocation3], 1
    %2418 = vsyncpa [#allocation5], 1
    %2419 = vsyncpa [#allocation8], 1
    %2420 = vsyncpa [#allocation11], 1
    %2421 = vsyncpa [#allocation14], 1
    %2422 = vsyncpa [#allocation17], 1

</llo_original>
